<compile_context>
chip_gen: v7x
topology: tpu7x:2x2x1
jax: 0.10.0
libtpu: 0.0.40
codegen_flags: <defaults>
</compile_context>

<pallas_src>
import jax
import jax.numpy as jnp
from jax.experimental import pallas as pl
from jax.experimental.pallas import tpu as pltpu

# small shapes consistent with the module
B = 2    # batch_size
T = 8    # max_time (encoder sequence length)
H = 32   # decoder_hidden
E = 32   # embedding_dim (defaults to hidden_size)
V = 32   # n_classes

B_PAD = 8          # pad batch to the f32 sublane count -> full vregs
LANES = 128        # single lane-dense packed output (B_PAD, 128)
NEG_BIG = -1e30    # finite "-inf" so an all-masked row can't produce NaN

# packed-output column layout
OFF_H = 0
OFF_CTX = H
OFF_LOGP = 2 * H
OFF_ATTN = 2 * H + V
PACK_USED = 2 * H + V + T          # = 104 < 128


def decoder_step_kernel(tok_ref, seqlen_ref, emb_ref, w_ih_ref, w_hh_ref,
                        b_ih_ref, b_hh_ref, w_out_ref, h_prev_ref, enc_ref,
                        out_ref):
    bp = h_prev_ref.shape[0]                                   # = B_PAD

    # ---- 1. embedding lookup: one-hot built in-kernel from SMEM token ids
    #         (row 0 of the table is zero, matching padding_idx=0) ----
    v_iota = jax.lax.broadcasted_iota(jnp.int32, (bp, V), 1)
    b_iota = jax.lax.broadcasted_iota(jnp.int32, (bp, V), 0)
    tok_mat = jnp.full((bp, V), -1, dtype=jnp.int32)
    for b in range(bp):                                        # bp scalar reads
        tok_mat = jnp.where(b_iota == b, tok_ref[b], tok_mat)
    onehot = (v_iota == tok_mat).astype(jnp.float32)
    emb = jnp.dot(onehot, emb_ref[...],
                  preferred_element_type=jnp.float32)          # (bp, E)

    # ---- 2. GRU cell (PyTorch semantics, gate order r, z, n) ----
    # weights arrive pre-transposed/pre-split: (3, E, H) / (3, H, H);
    # gate selection is a free leading-axis view (no lane slicing).
    h_prev = h_prev_ref[...]                                   # (bp, H)

    def gates(x, w_ref, b_ref):
        return [jnp.dot(x, w_ref[g], preferred_element_type=jnp.float32)
                + b_ref[g] for g in range(3)]

    gx_r, gx_z, gx_n = gates(emb, w_ih_ref, b_ih_ref)
    gh_r, gh_z, gh_n = gates(h_prev, w_hh_ref, b_hh_ref)
    r = jax.nn.sigmoid(gx_r + gh_r)
    z = jax.nn.sigmoid(gx_z + gh_z)
    n = jnp.tanh(gx_n + r * gh_n)
    h_new = (1.0 - z) * n + z * h_prev                         # (bp, H)

    # ---- 3. dot attention: energies[b, t] = <enc[b, t, :], h_new[b, :]> ----
    enc = enc_ref[...]                                         # (bp, T, H)
    energies = jnp.sum(enc * h_new[:, None, :], axis=-1)       # (bp, T)

    # mask_3d from SMEM scalars: rows with seq_len < max(seq_len) get
    # NEG_BIG for t >= seq_len (finite so a fully-masked row stays NaN-free).
    t_iota = jax.lax.broadcasted_iota(jnp.int32, (bp, T), 1)
    bt_iota = jax.lax.broadcasted_iota(jnp.int32, (bp, T), 0)
    slen_mat = jnp.zeros((bp, T), dtype=jnp.int32)
    max_len = jnp.int32(0)
    for b in range(bp):
        sl = seqlen_ref[b]
        slen_mat = jnp.where(bt_iota == b, sl, slen_mat)
        max_len = jnp.maximum(max_len, sl)
    mask = (t_iota >= slen_mat) & (slen_mat < max_len)
    energies = jnp.where(mask, NEG_BIG, energies)

    # softmax over time axis (reciprocal on the otherwise-idle EUP slot)
    m = jnp.max(energies, axis=-1, keepdims=True)
    ex = jnp.exp(energies - m)
    attn = ex * pl.reciprocal(jnp.sum(ex, axis=-1, keepdims=True), approx=True)

    # ---- 4. context vector ----
    ctx = jnp.sum(attn[:, :, None] * enc, axis=1)              # (bp, H)

    # ---- 5. fused vocab projection + log_softmax (decoder_output_fn) ----
    # TODO(synk): the original module defines decoder_output_fn=F.log_softmax
    # but no projection Linear; W_out is supplied externally to realize it.
    logits = jnp.dot(h_new, w_out_ref[...],
                     preferred_element_type=jnp.float32)       # (bp, V)
    lm = jnp.max(logits, axis=-1, keepdims=True)
    lse = jnp.log(jnp.sum(jnp.exp(logits - lm), axis=-1, keepdims=True)) + lm
    logp = logits - lse

    # ---- single lane-dense packed store (bp, 128) ----
    pad = jnp.zeros((bp, LANES - PACK_USED), dtype=jnp.float32)
    out_ref[...] = jnp.concatenate([h_new, ctx, logp, attn, pad], axis=-1)


def decoder_step(token_ids, emb_table, w_ih, w_hh, b_ih, b_hh, w_out,
                 h_prev, encoder_outputs, seq_len):
    """One Luong dot-attention decoder step.

    Returns (h_new (B,H), attn (B,T), context (B,H), log_probs (B,V)).
    """
    b = token_ids.shape[0]
    pad_b = B_PAD - b
    # pad batch to full sublanes; padded rows use token 0 (padding_idx) and
    # seq_len 0, so they cannot change max(seq_len) or produce NaNs.
    tok_p = jnp.pad(token_ids.astype(jnp.int32), (0, pad_b))
    slen_p = jnp.pad(seq_len.astype(jnp.int32), (0, pad_b))
    h_prev_p = jnp.pad(h_prev, ((0, pad_b), (0, 0)))
    enc_p = jnp.pad(encoder_outputs, ((0, pad_b), (0, 0), (0, 0)))

    # pre-transpose / pre-split the static GRU weights once on the host:
    # PyTorch weight_ih (3H, E) -> (3, E, H); weight_hh (3H, H) -> (3, H, H)
    w_ih_k = jnp.transpose(w_ih.reshape(3, H, E), (0, 2, 1))
    w_hh_k = jnp.transpose(w_hh.reshape(3, H, H), (0, 2, 1))
    b_ih_k = b_ih.reshape(3, 1, H)
    b_hh_k = b_hh.reshape(3, 1, H)

    smem = pl.BlockSpec(memory_space=pltpu.MemorySpace.SMEM)
    vmem = pl.BlockSpec(memory_space=pltpu.MemorySpace.VMEM)
    packed = pl.pallas_call(
        decoder_step_kernel,
        out_shape=jax.ShapeDtypeStruct((B_PAD, LANES), jnp.float32),
        in_specs=[smem, smem] + [vmem] * 8,
        out_specs=vmem,
    )(tok_p, slen_p, emb_table, w_ih_k, w_hh_k, b_ih_k, b_hh_k, w_out,
      h_prev_p, enc_p)

    h_new = packed[:b, OFF_H:OFF_H + H]
    ctx = packed[:b, OFF_CTX:OFF_CTX + H]
    logp = packed[:b, OFF_LOGP:OFF_LOGP + V]
    attn = packed[:b, OFF_ATTN:OFF_ATTN + T]
    return h_new, attn, ctx, logp


def decoder_step_ref(token_ids, emb_table, w_ih, w_hh, b_ih, b_hh, w_out,
                     h_prev, enc, seq_len):
    """Pure-JAX reference with identical semantics (for the self-test)."""
    emb = emb_table[token_ids]
    gx = emb @ w_ih.T + b_ih.reshape(-1)
    gh = h_prev @ w_hh.T + b_hh.reshape(-1)
    r = jax.nn.sigmoid(gx[:, :H] + gh[:, :H])
    z = jax.nn.sigmoid(gx[:, H:2 * H] + gh[:, H:2 * H])
    n = jnp.tanh(gx[:, 2 * H:] + r * gh[:, 2 * H:])
    h_new = (1.0 - z) * n + z * h_prev
    energies = jnp.einsum('bth,bh->bt', enc, h_new)
    max_len = jnp.max(seq_len)
    t_idx = jnp.arange(T)[None, :]
    mask = (t_idx >= seq_len[:, None]) & (seq_len[:, None] < max_len)
    energies = jnp.where(mask, -jnp.inf, energies)
    attn = jax.nn.softmax(energies, axis=-1)
    ctx = jnp.einsum('bt,bth->bh', attn, enc)
    logp = jax.nn.log_softmax(h_new @ w_out, axis=-1)
    return h_new, attn, ctx, logp


def init_params(key):
    ks = jax.random.split(key, 7)
    scale = 0.1
    emb_table = scale * jax.random.normal(ks[0], (V, E), jnp.float32)
    emb_table = emb_table.at[0].set(0.0)                 # padding_idx=0
    w_ih = scale * jax.random.normal(ks[1], (3 * H, E), jnp.float32)
    w_hh = scale * jax.random.normal(ks[2], (3 * H, H), jnp.float32)
    b_ih = scale * jax.random.normal(ks[3], (1, 3 * H), jnp.float32)
    b_hh = scale * jax.random.normal(ks[4], (1, 3 * H), jnp.float32)
    w_out = scale * jax.random.normal(ks[5], (H, V), jnp.float32)
    return emb_table, w_ih, w_hh, b_ih, b_hh, w_out


if __name__ == "__main__":
    key = jax.random.PRNGKey(0)
    kp, kd = jax.random.split(key)
    emb_table, w_ih, w_hh, b_ih, b_hh, w_out = init_params(kp)

    kd1, kd2, kd3 = jax.random.split(kd, 3)
    token_ids = jax.random.randint(kd1, (B,), 1, V, dtype=jnp.int32)
    h_prev = 0.1 * jax.random.normal(kd2, (B, H), jnp.float32)
    encoder_outputs = 0.1 * jax.random.normal(kd3, (B, T, H), jnp.float32)
    seq_len = jnp.array([T, T - 3], dtype=jnp.int32)

    h_new, attn, ctx, logp = decoder_step(token_ids, emb_table, w_ih, w_hh,
                                          b_ih, b_hh, w_out, h_prev,
                                          encoder_outputs, seq_len)
    jax.block_until_ready((h_new, attn, ctx, logp))

    assert h_new.shape == (B, H) and attn.shape == (B, T)
    assert ctx.shape == (B, H) and logp.shape == (B, V)
    # attention rows sum to ~1 (approx reciprocal) and respect the mask exactly
    assert jnp.allclose(jnp.sum(attn, axis=-1), 1.0, atol=1e-2)
    assert float(jnp.max(jnp.abs(attn[1, T - 3:]))) == 0.0
    # log-probs are a valid log-softmax
    assert jnp.allclose(jnp.sum(jnp.exp(logp), axis=-1), 1.0, atol=1e-2)

    # compare against the pure-JAX reference
    r_h, r_attn, r_ctx, r_logp = decoder_step_ref(
        token_ids, emb_table, w_ih, w_hh, b_ih, b_hh, w_out, h_prev,
        encoder_outputs, seq_len)
    assert jnp.allclose(h_new, r_h, atol=1e-2, rtol=1e-2)
    assert jnp.allclose(attn, r_attn, atol=1e-2, rtol=1e-2)
    assert jnp.allclose(ctx, r_ctx, atol=1e-2, rtol=1e-2)
    assert jnp.allclose(logp, r_logp, atol=1e-2, rtol=1e-2)

    print("KERNEL_OK")
</pallas_src>

<mosaic_0001>
module attributes {stable_mosaic.version = 11 : i64} {
  func.func @decoder_step_kernel(%arg0: memref<8xi32, #tpu.memory_space<smem>>, %arg1: memref<8xi32, #tpu.memory_space<smem>>, %arg2: memref<32x32xf32, #tpu.memory_space<vmem>>, %arg3: memref<3x32x32xf32, #tpu.memory_space<vmem>>, %arg4: memref<3x32x32xf32, #tpu.memory_space<vmem>>, %arg5: memref<3x1x32xf32, #tpu.memory_space<vmem>>, %arg6: memref<3x1x32xf32, #tpu.memory_space<vmem>>, %arg7: memref<32x32xf32, #tpu.memory_space<vmem>>, %arg8: memref<8x32xf32, #tpu.memory_space<vmem>>, %arg9: memref<8x8x32xf32, #tpu.memory_space<vmem>>, %arg10: memref<8x128xf32, #tpu.memory_space<vmem>>) attributes {dimension_semantics = [], scalar_prefetch = 0 : i64, scratch_operands = 0 : i64, tpu.core_type = #tpu.core_type<tc>} {
    %0 = tpu.iota {dimensions = array<i32: 1>} : vector<8x32xi32>
    %1 = tpu.iota {dimensions = array<i32: 0>} : vector<8x32xi32>
    %c-1_i32 = arith.constant -1 : i32
    %2 = vector.broadcast %c-1_i32 : i32 to vector<8x32xi32>
    %c0_i32 = arith.constant 0 : i32
    %3 = vector.broadcast %c0_i32 : i32 to vector<8x32xi32>
    %4 = arith.cmpi eq, %1, %3 : vector<8x32xi32>
    %c0 = arith.constant 0 : index
    %5 = memref.load %arg0[%c0] : memref<8xi32, #tpu.memory_space<smem>>
    %6 = vector.broadcast %5 : i32 to vector<8x32xi32>
    %7 = arith.select %4, %6, %2 : vector<8x32xi1>, vector<8x32xi32>
    %c1_i32 = arith.constant 1 : i32
    %8 = vector.broadcast %c1_i32 : i32 to vector<8x32xi32>
    %9 = arith.cmpi eq, %1, %8 : vector<8x32xi32>
    %c1 = arith.constant 1 : index
    %10 = memref.load %arg0[%c1] : memref<8xi32, #tpu.memory_space<smem>>
    %11 = vector.broadcast %10 : i32 to vector<8x32xi32>
    %12 = arith.select %9, %11, %7 : vector<8x32xi1>, vector<8x32xi32>
    %c2_i32 = arith.constant 2 : i32
    %13 = vector.broadcast %c2_i32 : i32 to vector<8x32xi32>
    %14 = arith.cmpi eq, %1, %13 : vector<8x32xi32>
    %c2 = arith.constant 2 : index
    %15 = memref.load %arg0[%c2] : memref<8xi32, #tpu.memory_space<smem>>
    %16 = vector.broadcast %15 : i32 to vector<8x32xi32>
    %17 = arith.select %14, %16, %12 : vector<8x32xi1>, vector<8x32xi32>
    %c3_i32 = arith.constant 3 : i32
    %18 = vector.broadcast %c3_i32 : i32 to vector<8x32xi32>
    %19 = arith.cmpi eq, %1, %18 : vector<8x32xi32>
    %c3 = arith.constant 3 : index
    %20 = memref.load %arg0[%c3] : memref<8xi32, #tpu.memory_space<smem>>
    %21 = vector.broadcast %20 : i32 to vector<8x32xi32>
    %22 = arith.select %19, %21, %17 : vector<8x32xi1>, vector<8x32xi32>
    %c4_i32 = arith.constant 4 : i32
    %23 = vector.broadcast %c4_i32 : i32 to vector<8x32xi32>
    %24 = arith.cmpi eq, %1, %23 : vector<8x32xi32>
    %c4 = arith.constant 4 : index
    %25 = memref.load %arg0[%c4] : memref<8xi32, #tpu.memory_space<smem>>
    %26 = vector.broadcast %25 : i32 to vector<8x32xi32>
    %27 = arith.select %24, %26, %22 : vector<8x32xi1>, vector<8x32xi32>
    %c5_i32 = arith.constant 5 : i32
    %28 = vector.broadcast %c5_i32 : i32 to vector<8x32xi32>
    %29 = arith.cmpi eq, %1, %28 : vector<8x32xi32>
    %c5 = arith.constant 5 : index
    %30 = memref.load %arg0[%c5] : memref<8xi32, #tpu.memory_space<smem>>
    %31 = vector.broadcast %30 : i32 to vector<8x32xi32>
    %32 = arith.select %29, %31, %27 : vector<8x32xi1>, vector<8x32xi32>
    %c6_i32 = arith.constant 6 : i32
    %33 = vector.broadcast %c6_i32 : i32 to vector<8x32xi32>
    %34 = arith.cmpi eq, %1, %33 : vector<8x32xi32>
    %c6 = arith.constant 6 : index
    %35 = memref.load %arg0[%c6] : memref<8xi32, #tpu.memory_space<smem>>
    %36 = vector.broadcast %35 : i32 to vector<8x32xi32>
    %37 = arith.select %34, %36, %32 : vector<8x32xi1>, vector<8x32xi32>
    %c7_i32 = arith.constant 7 : i32
    %38 = vector.broadcast %c7_i32 : i32 to vector<8x32xi32>
    %39 = arith.cmpi eq, %1, %38 : vector<8x32xi32>
    %c7 = arith.constant 7 : index
    %40 = memref.load %arg0[%c7] : memref<8xi32, #tpu.memory_space<smem>>
    %41 = vector.broadcast %40 : i32 to vector<8x32xi32>
    %42 = arith.select %39, %41, %37 : vector<8x32xi1>, vector<8x32xi32>
    %43 = arith.cmpi eq, %0, %42 : vector<8x32xi32>
    %44 = arith.extui %43 : vector<8x32xi1> to vector<8x32xi32>
    %45 = arith.sitofp %44 : vector<8x32xi32> to vector<8x32xf32>
    %c0_0 = arith.constant 0 : index
    %c0_1 = arith.constant 0 : index
    %46 = vector.load %arg2[%c0_0, %c0_1] : memref<32x32xf32, #tpu.memory_space<vmem>>, vector<32x32xf32>
    %cst = arith.constant dense<0.000000e+00> : vector<8x32xf32>
    %47 = tpu.matmul %45, %46, %cst {dimension_numbers = #tpu.dot_dimension_numbers<[1], [0], [0], [1], [0, 0, 1, 1], [], []>} : vector<8x32xf32>, vector<32x32xf32>, vector<8x32xf32> -> vector<8x32xf32>
    %c0_2 = arith.constant 0 : index
    %c0_3 = arith.constant 0 : index
    %48 = vector.load %arg8[%c0_2, %c0_3] : memref<8x32xf32, #tpu.memory_space<vmem>>, vector<8x32xf32>
    %c0_4 = arith.constant 0 : index
    %c0_5 = arith.constant 0 : index
    %c0_6 = arith.constant 0 : index
    %49 = vector.load %arg3[%c0_4, %c0_5, %c0_6] : memref<3x32x32xf32, #tpu.memory_space<vmem>>, vector<1x32x32xf32>
    %50 = vector.shape_cast %49 : vector<1x32x32xf32> to vector<32x32xf32>
    %cst_7 = arith.constant dense<0.000000e+00> : vector<8x32xf32>
    %51 = tpu.matmul %47, %50, %cst_7 {dimension_numbers = #tpu.dot_dimension_numbers<[1], [0], [0], [1], [0, 0, 1, 1], [], []>} : vector<8x32xf32>, vector<32x32xf32>, vector<8x32xf32> -> vector<8x32xf32>
    %c0_8 = arith.constant 0 : index
    %c0_9 = arith.constant 0 : index
    %c0_10 = arith.constant 0 : index
    %52 = vector.load %arg5[%c0_8, %c0_9, %c0_10] : memref<3x1x32xf32, #tpu.memory_space<vmem>>, vector<1x1x32xf32>
    %53 = vector.shape_cast %52 : vector<1x1x32xf32> to vector<1x32xf32>
    %54 = vector.broadcast %53 : vector<1x32xf32> to vector<8x32xf32>
    %55 = arith.addf %51, %54 : vector<8x32xf32>
    %c1_11 = arith.constant 1 : index
    %c0_12 = arith.constant 0 : index
    %c0_13 = arith.constant 0 : index
    %56 = vector.load %arg3[%c1_11, %c0_12, %c0_13] : memref<3x32x32xf32, #tpu.memory_space<vmem>>, vector<1x32x32xf32>
    %57 = vector.shape_cast %56 : vector<1x32x32xf32> to vector<32x32xf32>
    %cst_14 = arith.constant dense<0.000000e+00> : vector<8x32xf32>
    %58 = tpu.matmul %47, %57, %cst_14 {dimension_numbers = #tpu.dot_dimension_numbers<[1], [0], [0], [1], [0, 0, 1, 1], [], []>} : vector<8x32xf32>, vector<32x32xf32>, vector<8x32xf32> -> vector<8x32xf32>
    %c1_15 = arith.constant 1 : index
    %c0_16 = arith.constant 0 : index
    %c0_17 = arith.constant 0 : index
    %59 = vector.load %arg5[%c1_15, %c0_16, %c0_17] : memref<3x1x32xf32, #tpu.memory_space<vmem>>, vector<1x1x32xf32>
    %60 = vector.shape_cast %59 : vector<1x1x32xf32> to vector<1x32xf32>
    %61 = vector.broadcast %60 : vector<1x32xf32> to vector<8x32xf32>
    %62 = arith.addf %58, %61 : vector<8x32xf32>
    %c2_18 = arith.constant 2 : index
    %c0_19 = arith.constant 0 : index
    %c0_20 = arith.constant 0 : index
    %63 = vector.load %arg3[%c2_18, %c0_19, %c0_20] : memref<3x32x32xf32, #tpu.memory_space<vmem>>, vector<1x32x32xf32>
    %64 = vector.shape_cast %63 : vector<1x32x32xf32> to vector<32x32xf32>
    %cst_21 = arith.constant dense<0.000000e+00> : vector<8x32xf32>
    %65 = tpu.matmul %47, %64, %cst_21 {dimension_numbers = #tpu.dot_dimension_numbers<[1], [0], [0], [1], [0, 0, 1, 1], [], []>} : vector<8x32xf32>, vector<32x32xf32>, vector<8x32xf32> -> vector<8x32xf32>
    %c2_22 = arith.constant 2 : index
    %c0_23 = arith.constant 0 : index
    %c0_24 = arith.constant 0 : index
    %66 = vector.load %arg5[%c2_22, %c0_23, %c0_24] : memref<3x1x32xf32, #tpu.memory_space<vmem>>, vector<1x1x32xf32>
    %67 = vector.shape_cast %66 : vector<1x1x32xf32> to vector<1x32xf32>
    %68 = vector.broadcast %67 : vector<1x32xf32> to vector<8x32xf32>
    %69 = arith.addf %65, %68 : vector<8x32xf32>
    %c0_25 = arith.constant 0 : index
    %c0_26 = arith.constant 0 : index
    %c0_27 = arith.constant 0 : index
    %70 = vector.load %arg4[%c0_25, %c0_26, %c0_27] : memref<3x32x32xf32, #tpu.memory_space<vmem>>, vector<1x32x32xf32>
    %71 = vector.shape_cast %70 : vector<1x32x32xf32> to vector<32x32xf32>
    %cst_28 = arith.constant dense<0.000000e+00> : vector<8x32xf32>
    %72 = tpu.matmul %48, %71, %cst_28 {dimension_numbers = #tpu.dot_dimension_numbers<[1], [0], [0], [1], [0, 0, 1, 1], [], []>} : vector<8x32xf32>, vector<32x32xf32>, vector<8x32xf32> -> vector<8x32xf32>
    %c0_29 = arith.constant 0 : index
    %c0_30 = arith.constant 0 : index
    %c0_31 = arith.constant 0 : index
    %73 = vector.load %arg6[%c0_29, %c0_30, %c0_31] : memref<3x1x32xf32, #tpu.memory_space<vmem>>, vector<1x1x32xf32>
    %74 = vector.shape_cast %73 : vector<1x1x32xf32> to vector<1x32xf32>
    %75 = vector.broadcast %74 : vector<1x32xf32> to vector<8x32xf32>
    %76 = arith.addf %72, %75 : vector<8x32xf32>
    %c1_32 = arith.constant 1 : index
    %c0_33 = arith.constant 0 : index
    %c0_34 = arith.constant 0 : index
    %77 = vector.load %arg4[%c1_32, %c0_33, %c0_34] : memref<3x32x32xf32, #tpu.memory_space<vmem>>, vector<1x32x32xf32>
    %78 = vector.shape_cast %77 : vector<1x32x32xf32> to vector<32x32xf32>
    %cst_35 = arith.constant dense<0.000000e+00> : vector<8x32xf32>
    %79 = tpu.matmul %48, %78, %cst_35 {dimension_numbers = #tpu.dot_dimension_numbers<[1], [0], [0], [1], [0, 0, 1, 1], [], []>} : vector<8x32xf32>, vector<32x32xf32>, vector<8x32xf32> -> vector<8x32xf32>
    %c1_36 = arith.constant 1 : index
    %c0_37 = arith.constant 0 : index
    %c0_38 = arith.constant 0 : index
    %80 = vector.load %arg6[%c1_36, %c0_37, %c0_38] : memref<3x1x32xf32, #tpu.memory_space<vmem>>, vector<1x1x32xf32>
    %81 = vector.shape_cast %80 : vector<1x1x32xf32> to vector<1x32xf32>
    %82 = vector.broadcast %81 : vector<1x32xf32> to vector<8x32xf32>
    %83 = arith.addf %79, %82 : vector<8x32xf32>
    %c2_39 = arith.constant 2 : index
    %c0_40 = arith.constant 0 : index
    %c0_41 = arith.constant 0 : index
    %84 = vector.load %arg4[%c2_39, %c0_40, %c0_41] : memref<3x32x32xf32, #tpu.memory_space<vmem>>, vector<1x32x32xf32>
    %85 = vector.shape_cast %84 : vector<1x32x32xf32> to vector<32x32xf32>
    %cst_42 = arith.constant dense<0.000000e+00> : vector<8x32xf32>
    %86 = tpu.matmul %48, %85, %cst_42 {dimension_numbers = #tpu.dot_dimension_numbers<[1], [0], [0], [1], [0, 0, 1, 1], [], []>} : vector<8x32xf32>, vector<32x32xf32>, vector<8x32xf32> -> vector<8x32xf32>
    %c2_43 = arith.constant 2 : index
    %c0_44 = arith.constant 0 : index
    %c0_45 = arith.constant 0 : index
    %87 = vector.load %arg6[%c2_43, %c0_44, %c0_45] : memref<3x1x32xf32, #tpu.memory_space<vmem>>, vector<1x1x32xf32>
    %88 = vector.shape_cast %87 : vector<1x1x32xf32> to vector<1x32xf32>
    %89 = vector.broadcast %88 : vector<1x32xf32> to vector<8x32xf32>
    %90 = arith.addf %86, %89 : vector<8x32xf32>
    %91 = arith.addf %55, %76 : vector<8x32xf32>
    %92 = arith.negf %91 : vector<8x32xf32>
    %93 = math.exp %92 : vector<8x32xf32>
    %cst_46 = arith.constant 1.000000e+00 : f32
    %94 = vector.broadcast %cst_46 : f32 to vector<8x32xf32>
    %95 = arith.addf %94, %93 : vector<8x32xf32>
    %96 = arith.divf %94, %95 : vector<8x32xf32>
    %97 = arith.addf %62, %83 : vector<8x32xf32>
    %98 = arith.negf %97 : vector<8x32xf32>
    %99 = math.exp %98 : vector<8x32xf32>
    %cst_47 = arith.constant 1.000000e+00 : f32
    %100 = vector.broadcast %cst_47 : f32 to vector<8x32xf32>
    %101 = arith.addf %100, %99 : vector<8x32xf32>
    %102 = arith.divf %100, %101 : vector<8x32xf32>
    %103 = arith.mulf %96, %90 : vector<8x32xf32>
    %104 = arith.addf %69, %103 : vector<8x32xf32>
    %105 = math.tanh %104 : vector<8x32xf32>
    %cst_48 = arith.constant 1.000000e+00 : f32
    %106 = vector.broadcast %cst_48 : f32 to vector<8x32xf32>
    %107 = arith.subf %106, %102 : vector<8x32xf32>
    %108 = arith.mulf %107, %105 : vector<8x32xf32>
    %109 = arith.mulf %102, %48 : vector<8x32xf32>
    %110 = arith.addf %108, %109 : vector<8x32xf32>
    %c0_49 = arith.constant 0 : index
    %c0_50 = arith.constant 0 : index
    %c0_51 = arith.constant 0 : index
    %111 = vector.load %arg9[%c0_49, %c0_50, %c0_51] : memref<8x8x32xf32, #tpu.memory_space<vmem>>, vector<8x8x32xf32>
    %112 = vector.shape_cast %110 : vector<8x32xf32> to vector<8x1x32xf32>
    %113 = vector.broadcast %112 : vector<8x1x32xf32> to vector<8x8x32xf32>
    %114 = arith.mulf %111, %113 : vector<8x8x32xf32>
    %cst_52 = arith.constant dense<0.000000e+00> : vector<8x8xf32>
    %115 = vector.multi_reduction <add>, %114, %cst_52 [2] : vector<8x8x32xf32> to vector<8x8xf32>
    %116 = tpu.iota {dimensions = array<i32: 1>} : vector<8x8xi32>
    %117 = tpu.iota {dimensions = array<i32: 0>} : vector<8x8xi32>
    %c0_i32_53 = arith.constant 0 : i32
    %118 = vector.broadcast %c0_i32_53 : i32 to vector<8x8xi32>
    %c0_54 = arith.constant 0 : index
    %119 = memref.load %arg1[%c0_54] : memref<8xi32, #tpu.memory_space<smem>>
    %c0_i32_55 = arith.constant 0 : i32
    %120 = vector.broadcast %c0_i32_55 : i32 to vector<8x8xi32>
    %121 = arith.cmpi eq, %117, %120 : vector<8x8xi32>
    %122 = vector.broadcast %119 : i32 to vector<8x8xi32>
    %123 = arith.select %121, %122, %118 : vector<8x8xi1>, vector<8x8xi32>
    %c0_i32_56 = arith.constant 0 : i32
    %124 = arith.maxsi %c0_i32_56, %119 : i32
    %c1_57 = arith.constant 1 : index
    %125 = memref.load %arg1[%c1_57] : memref<8xi32, #tpu.memory_space<smem>>
    %c1_i32_58 = arith.constant 1 : i32
    %126 = vector.broadcast %c1_i32_58 : i32 to vector<8x8xi32>
    %127 = arith.cmpi eq, %117, %126 : vector<8x8xi32>
    %128 = vector.broadcast %125 : i32 to vector<8x8xi32>
    %129 = arith.select %127, %128, %123 : vector<8x8xi1>, vector<8x8xi32>
    %130 = arith.maxsi %124, %125 : i32
    %c2_59 = arith.constant 2 : index
    %131 = memref.load %arg1[%c2_59] : memref<8xi32, #tpu.memory_space<smem>>
    %c2_i32_60 = arith.constant 2 : i32
    %132 = vector.broadcast %c2_i32_60 : i32 to vector<8x8xi32>
    %133 = arith.cmpi eq, %117, %132 : vector<8x8xi32>
    %134 = vector.broadcast %131 : i32 to vector<8x8xi32>
    %135 = arith.select %133, %134, %129 : vector<8x8xi1>, vector<8x8xi32>
    %136 = arith.maxsi %130, %131 : i32
    %c3_61 = arith.constant 3 : index
    %137 = memref.load %arg1[%c3_61] : memref<8xi32, #tpu.memory_space<smem>>
    %c3_i32_62 = arith.constant 3 : i32
    %138 = vector.broadcast %c3_i32_62 : i32 to vector<8x8xi32>
    %139 = arith.cmpi eq, %117, %138 : vector<8x8xi32>
    %140 = vector.broadcast %137 : i32 to vector<8x8xi32>
    %141 = arith.select %139, %140, %135 : vector<8x8xi1>, vector<8x8xi32>
    %142 = arith.maxsi %136, %137 : i32
    %c4_63 = arith.constant 4 : index
    %143 = memref.load %arg1[%c4_63] : memref<8xi32, #tpu.memory_space<smem>>
    %c4_i32_64 = arith.constant 4 : i32
    %144 = vector.broadcast %c4_i32_64 : i32 to vector<8x8xi32>
    %145 = arith.cmpi eq, %117, %144 : vector<8x8xi32>
    %146 = vector.broadcast %143 : i32 to vector<8x8xi32>
    %147 = arith.select %145, %146, %141 : vector<8x8xi1>, vector<8x8xi32>
    %148 = arith.maxsi %142, %143 : i32
    %c5_65 = arith.constant 5 : index
    %149 = memref.load %arg1[%c5_65] : memref<8xi32, #tpu.memory_space<smem>>
    %c5_i32_66 = arith.constant 5 : i32
    %150 = vector.broadcast %c5_i32_66 : i32 to vector<8x8xi32>
    %151 = arith.cmpi eq, %117, %150 : vector<8x8xi32>
    %152 = vector.broadcast %149 : i32 to vector<8x8xi32>
    %153 = arith.select %151, %152, %147 : vector<8x8xi1>, vector<8x8xi32>
    %154 = arith.maxsi %148, %149 : i32
    %c6_67 = arith.constant 6 : index
    %155 = memref.load %arg1[%c6_67] : memref<8xi32, #tpu.memory_space<smem>>
    %c6_i32_68 = arith.constant 6 : i32
    %156 = vector.broadcast %c6_i32_68 : i32 to vector<8x8xi32>
    %157 = arith.cmpi eq, %117, %156 : vector<8x8xi32>
    %158 = vector.broadcast %155 : i32 to vector<8x8xi32>
    %159 = arith.select %157, %158, %153 : vector<8x8xi1>, vector<8x8xi32>
    %160 = arith.maxsi %154, %155 : i32
    %c7_69 = arith.constant 7 : index
    %161 = memref.load %arg1[%c7_69] : memref<8xi32, #tpu.memory_space<smem>>
    %c7_i32_70 = arith.constant 7 : i32
    %162 = vector.broadcast %c7_i32_70 : i32 to vector<8x8xi32>
    %163 = arith.cmpi eq, %117, %162 : vector<8x8xi32>
    %164 = vector.broadcast %161 : i32 to vector<8x8xi32>
    %165 = arith.select %163, %164, %159 : vector<8x8xi1>, vector<8x8xi32>
    %166 = arith.maxsi %160, %161 : i32
    %167 = arith.cmpi sge, %116, %165 : vector<8x8xi32>
    %168 = vector.broadcast %166 : i32 to vector<8x8xi32>
    %169 = arith.cmpi slt, %165, %168 : vector<8x8xi32>
    %170 = arith.andi %167, %169 : vector<8x8xi1>
    %cst_71 = arith.constant -1.000000e+30 : f32
    %171 = vector.broadcast %cst_71 : f32 to vector<8x8xf32>
    %172 = arith.select %170, %171, %115 : vector<8x8xi1>, vector<8x8xf32>
    %cst_72 = arith.constant dense<0xFF800000> : vector<8xf32>
    %173 = vector.multi_reduction <maximumf>, %172, %cst_72 [1] : vector<8x8xf32> to vector<8xf32>
    %174 = vector.shape_cast %173 : vector<8xf32> to vector<8x1xf32>
    %175 = vector.broadcast %174 : vector<8x1xf32> to vector<8x8xf32>
    %176 = arith.subf %172, %175 : vector<8x8xf32>
    %177 = math.exp %176 : vector<8x8xf32>
    %cst_73 = arith.constant dense<0.000000e+00> : vector<8xf32>
    %178 = vector.multi_reduction <add>, %177, %cst_73 [1] : vector<8x8xf32> to vector<8xf32>
    %179 = vector.shape_cast %178 : vector<8xf32> to vector<8x1xf32>
    %180 = tpu.reciprocal %179 {approx = true} : vector<8x1xf32> -> vector<8x1xf32>
    %181 = vector.broadcast %180 : vector<8x1xf32> to vector<8x8xf32>
    %182 = arith.mulf %177, %181 : vector<8x8xf32>
    %183 = vector.shape_cast %182 : vector<8x8xf32> to vector<8x8x1xf32>
    %184 = vector.broadcast %183 : vector<8x8x1xf32> to vector<8x8x32xf32>
    %185 = arith.mulf %184, %111 : vector<8x8x32xf32>
    %cst_74 = arith.constant dense<0.000000e+00> : vector<8x32xf32>
    %186 = vector.multi_reduction <add>, %185, %cst_74 [1] : vector<8x8x32xf32> to vector<8x32xf32>
    %c0_75 = arith.constant 0 : index
    %c0_76 = arith.constant 0 : index
    %187 = vector.load %arg7[%c0_75, %c0_76] : memref<32x32xf32, #tpu.memory_space<vmem>>, vector<32x32xf32>
    %cst_77 = arith.constant dense<0.000000e+00> : vector<8x32xf32>
    %188 = tpu.matmul %110, %187, %cst_77 {dimension_numbers = #tpu.dot_dimension_numbers<[1], [0], [0], [1], [0, 0, 1, 1], [], []>} : vector<8x32xf32>, vector<32x32xf32>, vector<8x32xf32> -> vector<8x32xf32>
    %cst_78 = arith.constant dense<0xFF800000> : vector<8xf32>
    %189 = vector.multi_reduction <maximumf>, %188, %cst_78 [1] : vector<8x32xf32> to vector<8xf32>
    %190 = vector.shape_cast %189 : vector<8xf32> to vector<8x1xf32>
    %191 = vector.broadcast %190 : vector<8x1xf32> to vector<8x32xf32>
    %192 = arith.subf %188, %191 : vector<8x32xf32>
    %193 = math.exp %192 : vector<8x32xf32>
    %cst_79 = arith.constant dense<0.000000e+00> : vector<8xf32>
    %194 = vector.multi_reduction <add>, %193, %cst_79 [1] : vector<8x32xf32> to vector<8xf32>
    %195 = vector.shape_cast %194 : vector<8xf32> to vector<8x1xf32>
    %196 = math.log %195 : vector<8x1xf32>
    %197 = arith.addf %196, %190 : vector<8x1xf32>
    %198 = vector.broadcast %197 : vector<8x1xf32> to vector<8x32xf32>
    %199 = arith.subf %188, %198 : vector<8x32xf32>
    %cst_80 = arith.constant 0.000000e+00 : f32
    %200 = vector.broadcast %cst_80 : f32 to vector<8x24xf32>
    %201 = tpu.concatenate %110, %186, %199, %182, %200 in 1 : vector<8x32xf32>, vector<8x32xf32>, vector<8x32xf32>, vector<8x8xf32>, vector<8x24xf32> -> vector<8x128xf32>
    %c0_81 = arith.constant 0 : index
    %c0_82 = arith.constant 0 : index
    %202 = vector.load %arg10[%c0_81, %c0_82] : memref<8x128xf32, #tpu.memory_space<vmem>>, vector<8x128xf32>
    tpu.vector_store %arg10[%c0_81, %c0_82], %201 {strides = array<i32>} : memref<8x128xf32, #tpu.memory_space<vmem>>, vector<8x128xf32>,
    return
  }
}

</mosaic_0001>

<llo_original>
// kernel: tpu_custom_call.1
$region0: #{tpu_custom_call.1}
  #allocation0 [shape = 'u32[]', space=smem, size = 0x4, offset = 0x4, fixed_abs, tag = 'smem constant byte address 0x4 - core index']
  #allocation1 [shape = 'u32[144,128]{1,0:T(1,128)}', space=vmem, size = 0x12000, scoped, tag = 'internal scratch']
  %s0 = inlined_call_operand.hbm [shape: s32[8], index: 0, kind: input, shape index: {}]
  %s1 = inlined_call_operand.vmem [shape: s32[8], index: 1, kind: input, shape index: {}]
  %s2 = inlined_call_operand.hbm [shape: f32[32,32], index: 2, kind: input, shape index: {}]
  %s3 = inlined_call_operand.hbm [shape: f32[3,32,32], index: 3, kind: input, shape index: {}]
  %s4 = inlined_call_operand.hbm [shape: f32[3,32,32], index: 4, kind: input, shape index: {}]
  %s5 = inlined_call_operand.vmem [shape: f32[3,1,32], index: 5, kind: input, shape index: {}]
  %s6 = inlined_call_operand.vmem [shape: f32[3,1,32], index: 6, kind: input, shape index: {}]
  %s7 = inlined_call_operand.hbm [shape: f32[32,32], index: 7, kind: input, shape index: {}]
  %s8 = inlined_call_operand.vmem [shape: f32[8,32], index: 8, kind: input, shape index: {}]
  %s9 = inlined_call_operand.hbm [shape: f32[8,8,32], index: 9, kind: input, shape index: {}]
  %s10 = inlined_call_operand.hbm [shape: f32[8,128], index: 10, kind: output, shape index: {}]
  %s11 = sld [smem:[#allocation0]]
  $region78: #{tpu_custom_call.1} parent=0
    _
  %s13 = ssub.s32 1, %s11
  %s14 = scalar_select 0, %s13, %s11
  $region1: #{tpu_custom_call.1} parent=0
    #allocation2 [shape = 'u8[512]{0}', space=smem, size = 0x200, scoped, tag = 'input window, operand 0, single buffered']
    #allocation3 [shape = 's32[1]{0}', space=sflag, size = 0x4, scoped, tag = 'scoped memory for tpu_custom_call.1']
    #allocation4 [shape = 's32[1]{0}', space=sflag, size = 0x4, scoped, tag = 'scoped memory for tpu_custom_call.1']
    #allocation5 [shape = 's32[1]{0}', space=sflag, size = 0x4, scoped, tag = 'scoped memory for tpu_custom_call.1']
    #allocation6 [shape = 's32[1]{0}', space=sflag, size = 0x4, scoped, tag = 'scoped memory for tpu_custom_call.1']
    #allocation7 [shape = 'u8[512]{0}', space=smem, size = 0x200, scoped, tag = 'input window, operand 1, single buffered']
    #allocation8 [shape = 'u8[16384]{0}', space=vmem, size = 0x4000, scoped, tag = 'input window, operand 2, single buffered']
    #allocation9 [shape = 'u8[49152]{0}', space=vmem, size = 0xc000, scoped, tag = 'input window, operand 3, single buffered']
    #allocation10 [shape = 's32[1]{0}', space=sflag, size = 0x4, scoped, tag = 'scoped memory for tpu_custom_call.1']
    #allocation11 [shape = 'u8[49152]{0}', space=vmem, size = 0xc000, scoped, tag = 'input window, operand 4, single buffered']
    #allocation12 [shape = 'u8[16384]{0}', space=vmem, size = 0x4000, scoped, tag = 'input window, operand 7, single buffered']
    #allocation13 [shape = 's32[1]{0}', space=sflag, size = 0x4, scoped, tag = 'scoped memory for tpu_custom_call.1']
    #allocation14 [shape = 'u8[32768]{0}', space=vmem, size = 0x8000, scoped, tag = 'input window, operand 9, single buffered']
    #allocation15 [shape = 'u8[4096]{0}', space=vmem, size = 0x1000, scoped, tag = 'output window, operand 0, single buffered']
    %15 = vsyncpa [#allocation5], 0
    %16 = vsyncpa [#allocation6], 0
    %17 = vsyncpa [#allocation3], 0
    %18 = vsyncpa [#allocation10], 0
    %19 = vsyncpa [#allocation13], 0
    %20 = vsyncpa [#allocation4], 0
    // Predicated region
    $region2: #{tpu_custom_call.1} parent=1 // pred_check
      _
    $region3: #{tpu_custom_call.1} parent=1 // pred_check_branch
      %22 = sbr.rel (0) target = $region5
    $region4: #{tpu_custom_call.1} parent=1 // pred_region
      %s24 = ssub.s32 16, 16
      %25 = vsyncadd [#allocation5], %s24
      %28 = dma.hbm_to_smem %s0, 16, [#allocation2], [#allocation5]
    $region5: #{tpu_custom_call.1} parent=1 // pred_fallthru
      _
    // Predicated region
    $region6: #{tpu_custom_call.1} parent=1 // pred_check
      _
    $region7: #{tpu_custom_call.1} parent=1 // pred_check_branch
      %30 = sbr.rel (0) target = $region9
    $region8: #{tpu_custom_call.1} parent=1 // pred_region
      %s32 = ssub.s32 16, 16
      %33 = vsyncadd [#allocation6], %s32
      %s35 = sshll.u32 %s1, 4
      %s36 = int_to_ptr.vmem [resolvable:$true] %s35
      %38 = dma.vmem_to_smem %s36, 16, [#allocation7], [#allocation6]
    $region9: #{tpu_custom_call.1} parent=1 // pred_fallthru
      _
    // Predicated region
    $region10: #{tpu_custom_call.1} parent=1 // pred_check
      _
    $region11: #{tpu_custom_call.1} parent=1 // pred_check_branch
      %40 = sbr.rel (0) target = $region13
    $region12: #{tpu_custom_call.1} parent=1 // pred_region
      %s42 = ssub.s32 512, 512
      %43 = vsyncadd [#allocation3], %s42
      %s44 = sshll.u32 [#allocation8], 4
      %s45 = int_to_ptr.vmem [resolvable:$true] %s44
      %50 = dma.hbm_to_vmem [thread:$0]  %s2, 512, %s45, [#allocation3], 128, 128, 8
    $region13: #{tpu_custom_call.1} parent=1 // pred_fallthru
      _
    // Predicated region
    $region14: #{tpu_custom_call.1} parent=1 // pred_check
      _
    $region15: #{tpu_custom_call.1} parent=1 // pred_check_branch
      %52 = sbr.rel (0) target = $region17
    $region16: #{tpu_custom_call.1} parent=1 // pred_region
      %s54 = ssub.s32 1536, 1536
      %55 = vsyncadd [#allocation10], %s54
      %s56 = sshll.u32 [#allocation9], 4
      %s57 = int_to_ptr.vmem [resolvable:$true] %s56
      %62 = dma.hbm_to_vmem [thread:$0]  %s3, 1536, %s57, [#allocation10], 128, 128, 8
    $region17: #{tpu_custom_call.1} parent=1 // pred_fallthru
      _
    // Predicated region
    $region18: #{tpu_custom_call.1} parent=1 // pred_check
      _
    $region19: #{tpu_custom_call.1} parent=1 // pred_check_branch
      %64 = sbr.rel (0) target = $region21
    $region20: #{tpu_custom_call.1} parent=1 // pred_region
      %s66 = ssub.s32 1536, 1536
      %67 = vsyncadd [#allocation10], %s66
      %s68 = sshll.u32 [#allocation11], 4
      %s69 = int_to_ptr.vmem [resolvable:$true] %s68
      %74 = dma.hbm_to_vmem [thread:$0]  %s4, 1536, %s69, [#allocation10], 128, 128, 8
    $region21: #{tpu_custom_call.1} parent=1 // pred_fallthru
      _
    // Predicated region
    $region22: #{tpu_custom_call.1} parent=1 // pred_check
      _
    $region23: #{tpu_custom_call.1} parent=1 // pred_check_branch
      %76 = sbr.rel (0) target = $region25
    $region24: #{tpu_custom_call.1} parent=1 // pred_region
      _
    $region25: #{tpu_custom_call.1} parent=1 // pred_fallthru
      _
    // Predicated region
    $region26: #{tpu_custom_call.1} parent=1 // pred_check
      _
    $region27: #{tpu_custom_call.1} parent=1 // pred_check_branch
      %78 = sbr.rel (0) target = $region29
    $region28: #{tpu_custom_call.1} parent=1 // pred_region
      _
    $region29: #{tpu_custom_call.1} parent=1 // pred_fallthru
      _
    // Predicated region
    $region30: #{tpu_custom_call.1} parent=1 // pred_check
      _
    $region31: #{tpu_custom_call.1} parent=1 // pred_check_branch
      %80 = sbr.rel (0) target = $region33
    $region32: #{tpu_custom_call.1} parent=1 // pred_region
      %s82 = ssub.s32 512, 512
      %83 = vsyncadd [#allocation13], %s82
      %s84 = sshll.u32 [#allocation12], 4
      %s85 = int_to_ptr.vmem [resolvable:$true] %s84
      %90 = dma.hbm_to_vmem [thread:$0]  %s7, 512, %s85, [#allocation13], 128, 128, 8
    $region33: #{tpu_custom_call.1} parent=1 // pred_fallthru
      _
    // Predicated region
    $region34: #{tpu_custom_call.1} parent=1 // pred_check
      _
    $region35: #{tpu_custom_call.1} parent=1 // pred_check_branch
      %92 = sbr.rel (0) target = $region37
    $region36: #{tpu_custom_call.1} parent=1 // pred_region
      _
    $region37: #{tpu_custom_call.1} parent=1 // pred_fallthru
      _
    // Predicated region
    $region38: #{tpu_custom_call.1} parent=1 // pred_check
      _
    $region39: #{tpu_custom_call.1} parent=1 // pred_check_branch
      %94 = sbr.rel (0) target = $region41
    $region40: #{tpu_custom_call.1} parent=1 // pred_region
      %s96 = ssub.s32 1024, 1024
      %97 = vsyncadd [#allocation13], %s96
      %s98 = sshll.u32 [#allocation14], 4
      %s99 = int_to_ptr.vmem [resolvable:$true] %s98
      %104 = dma.hbm_to_vmem [thread:$0]  %s9, 1024, %s99, [#allocation13], 128, 128, 8
    $region41: #{tpu_custom_call.1} parent=1 // pred_fallthru
      _
    // Predicated region
    $region42: #{tpu_custom_call.1} parent=1 // pred_check
      _
    $region43: #{tpu_custom_call.1} parent=1 // pred_check_branch
      %106 = sbr.rel (0) target = $region45
    $region44: #{tpu_custom_call.1} parent=1 // pred_region
      %107 = dma.done [#allocation5], 16
    $region45: #{tpu_custom_call.1} parent=1 // pred_fallthru
      _
    // Predicated region
    $region46: #{tpu_custom_call.1} parent=1 // pred_check
      _
    $region47: #{tpu_custom_call.1} parent=1 // pred_check_branch
      %109 = sbr.rel (0) target = $region49
    $region48: #{tpu_custom_call.1} parent=1 // pred_region
      %110 = dma.done [#allocation6], 16
    $region49: #{tpu_custom_call.1} parent=1 // pred_fallthru
      _
    // Predicated region
    $region50: #{tpu_custom_call.1} parent=1 // pred_check
      _
    $region51: #{tpu_custom_call.1} parent=1 // pred_check_branch
      %112 = sbr.rel (0) target = $region53
    $region52: #{tpu_custom_call.1} parent=1 // pred_region
      %113 = dma.done [#allocation3], 512
    $region53: #{tpu_custom_call.1} parent=1 // pred_fallthru
      _
    // Predicated region
    $region54: #{tpu_custom_call.1} parent=1 // pred_check
      _
    $region55: #{tpu_custom_call.1} parent=1 // pred_check_branch
      %115 = sbr.rel (0) target = $region57
    $region56: #{tpu_custom_call.1} parent=1 // pred_region
      %116 = dma.done [#allocation10], 1536
    $region57: #{tpu_custom_call.1} parent=1 // pred_fallthru
      _
    // Predicated region
    $region58: #{tpu_custom_call.1} parent=1 // pred_check
      _
    $region59: #{tpu_custom_call.1} parent=1 // pred_check_branch
      %118 = sbr.rel (0) target = $region61
    $region60: #{tpu_custom_call.1} parent=1 // pred_region
      %119 = dma.done [#allocation10], 1536
    $region61: #{tpu_custom_call.1} parent=1 // pred_fallthru
      _
    // Predicated region
    $region62: #{tpu_custom_call.1} parent=1 // pred_check
      _
    $region63: #{tpu_custom_call.1} parent=1 // pred_check_branch
      %121 = sbr.rel (0) target = $region65
    $region64: #{tpu_custom_call.1} parent=1 // pred_region
      %122 = dma.done [#allocation13], 512
    $region65: #{tpu_custom_call.1} parent=1 // pred_fallthru
      _
    // Predicated region
    $region66: #{tpu_custom_call.1} parent=1 // pred_check
      _
    $region67: #{tpu_custom_call.1} parent=1 // pred_check_branch
      %124 = sbr.rel (0) target = $region69
    $region68: #{tpu_custom_call.1} parent=1 // pred_region
      %125 = dma.done [#allocation13], 1024
    $region69: #{tpu_custom_call.1} parent=1 // pred_fallthru
      _
    %126 = sfence
    %v127 = vlaneseq
    %v128 = vand.u32 %v127, 127
    %v129 = vlaneseq
    %v130 = vshrl.u32 %v129, 7
    %vm131 = vcmp.eq.s32.totalorder %v130, 0
    %s132 = sld [smem:[#allocation2]]
    %v133 = vstv %s132
    %v134 = vsel %vm131, %v133, 4294967295
    %vm135 = vcmp.eq.s32.totalorder %v130, 1
    %s136 = sld [smem:[#allocation2 + $0x1]]
    %v137 = vstv %s136
    %v138 = vsel %vm135, %v137, %v134
    %vm139 = vcmp.eq.s32.totalorder %v130, 2
    %s140 = sld [smem:[#allocation2 + $0x2]]
    %v141 = vstv %s140
    %v142 = vsel %vm139, %v141, %v138
    %vm143 = vcmp.eq.s32.totalorder %v130, 3
    %s144 = sld [smem:[#allocation2 + $0x3]]
    %v145 = vstv %s144
    %v146 = vsel %vm143, %v145, %v142
    %vm147 = vcmp.eq.s32.totalorder %v130, 4
    %s148 = sld [smem:[#allocation2 + $0x4]]
    %v149 = vstv %s148
    %v150 = vsel %vm147, %v149, %v146
    %vm151 = vcmp.eq.s32.totalorder %v130, 5
    %s152 = sld [smem:[#allocation2 + $0x5]]
    %v153 = vstv %s152
    %v154 = vsel %vm151, %v153, %v150
    %vm155 = vcmp.eq.s32.totalorder %v130, 6
    %s156 = sld [smem:[#allocation2 + $0x6]]
    %v157 = vstv %s156
    %v158 = vsel %vm155, %v157, %v154
    %vm159 = vcmp.eq.s32.totalorder %v130, 7
    %s160 = sld [smem:[#allocation2 + $0x7]]
    %v161 = vstv %s160
    %v162 = vsel %vm159, %v161, %v158
    %vm163 = vcmp.eq.s32.totalorder %v128, %v162
    %v164 = vsel %vm163, 1, 0
    %v165 = vcvt.s32.f32 %v164
    %v166 = vld [vmem:[#allocation8] sm:$0xff]
    %v167 = vld [vmem:[#allocation8 + $0x8] sm:$0xff]
    %v168 = vld [vmem:[#allocation8 + $0x10] sm:$0xff]
    %v169 = vld [vmem:[#allocation8 + $0x18] sm:$0xff]
    %vm170 = vcmask 261120
    %v172 = vsel %vm170, %v165, 0
    %174 = vmatprep.subr.mxu0 0.0
    %175 = vmatpush1.msra.mxu0 %v166
    %176 = vmatprep.subr.mxu0 0.0
    %177 = vmatpush1.msra.mxu0 %v167
    %178 = vmatprep.subr.mxu0 0.0
    %179 = vmatpush1.msra.mxu0 %v168
    %180 = vmatprep.subr.mxu0 0.0
    %181 = vmatpush1.msra.mxu0 %v169
    %182 = vmatprep.subr.mxu0 0.0
    %183 = vmatpush1.msra.mxu0 0.0
    %184 = vmatprep.subr.mxu0 0.0
    %185 = vmatpush1.msra.mxu0 0.0
    %186 = vmatprep.subr.mxu0 0.0
    %187 = vmatpush1.msra.mxu0 0.0
    %188 = vmatprep.subr.mxu0 0.0
    %189 = vmatpush1.msra.mxu0 0.0
    %190 = vmatprep.subr.mxu0 0.0
    %191 = vmatpush1.msra.mxu0 0.0
    %192 = vmatprep.subr.mxu0 0.0
    %193 = vmatpush1.msra.mxu0 0.0
    %194 = vmatprep.subr.mxu0 0.0
    %195 = vmatpush1.msra.mxu0 0.0
    %196 = vmatprep.subr.mxu0 0.0
    %197 = vmatpush1.msra.mxu0 0.0
    %198 = vmatprep.subr.mxu0 0.0
    %199 = vmatpush1.msra.mxu0 0.0
    %200 = vmatprep.subr.mxu0 0.0
    %201 = vmatpush1.msra.mxu0 0.0
    %202 = vmatprep.subr.mxu0 0.0
    %203 = vmatpush1.msra.mxu0 0.0
    %204 = vmatprep.subr.mxu0 0.0
    %205 = vmatpush1.msra.mxu0 0.0
    %206 = vmatprep.subr.mxu0 0.0
    %207 = vmatpush1.msra.mxu0 0.0
    %208 = vmatprep.subr.mxu0 0.0
    %209 = vmatpush1.msra.mxu0 0.0
    %210 = vmatprep.subr.mxu0 0.0
    %211 = vmatpush1.msra.mxu0 0.0
    %212 = vmatprep.subr.mxu0 0.0
    %213 = vmatpush1.msra.mxu0 0.0
    %214 = vmatprep.subr.mxu0 0.0
    %215 = vmatpush1.msra.mxu0 0.0
    %216 = vmatprep.subr.mxu0 0.0
    %217 = vmatpush1.msra.mxu0 0.0
    %218 = vmatprep.subr.mxu0 0.0
    %219 = vmatpush1.msra.mxu0 0.0
    %220 = vmatprep.subr.mxu0 0.0
    %221 = vmatpush1.msra.mxu0 0.0
    %222 = vmatprep.subr.mxu0 0.0
    %223 = vmatpush1.msra.mxu0 0.0
    %224 = vmatprep.subr.mxu0 0.0
    %225 = vmatpush1.msra.mxu0 0.0
    %226 = vmatprep.subr.mxu0 0.0
    %227 = vmatpush1.msra.mxu0 0.0
    %228 = vmatprep.subr.mxu0 0.0
    %229 = vmatpush1.msra.mxu0 0.0
    %230 = vmatprep.subr.mxu0 0.0
    %231 = vmatpush1.msra.mxu0 0.0
    %232 = vmatprep.subr.mxu0 0.0
    %233 = vmatpush1.msra.mxu0 0.0
    %234 = vmatprep.subr.mxu0 0.0
    %235 = vmatpush1.msra.mxu0 0.0
    %236 = vmatprep.subr.mxu0 0.0
    %237 = vmatpush1.msra.mxu0 0.0
    %238 = vmatprep.mubr.f32.mxu0 0.0
    %239 = vmatmul.mubr.f32.gmra.mrb[0].mxu0 %v172
    %v240 = vpop.f32.mrb[0].mxu0
    %v241 = vadd.f32 0.0, %v240
    %v242 = vpop.f32.mrb[0].mxu0
    %243 = vdwg.mxu0
    %v244 = vld [vmem:[%s8] sm:$0xff]
    %v245 = vld [vmem:[#allocation9] sm:$0xff]
    %v246 = vld [vmem:[#allocation9 + $0x8] sm:$0xff]
    %v247 = vld [vmem:[#allocation9 + $0x10] sm:$0xff]
    %v248 = vld [vmem:[#allocation9 + $0x18] sm:$0xff]
    %v249 = vld [vmem:[%s5] sm:$0x1]
    %v251 = vlaneseq
    %v252 = vshrl.u32 %v251, 7
    %v253 = vsub.s32 0, %v252
    %v254 = vrot.slane %v249, %v253
    %v257 = vsel %vm170, %v241, 0
    %259 = vmatprep.subr.mxu0 0.0
    %260 = vmatpush1.msra.mxu0 %v245
    %261 = vmatprep.subr.mxu0 0.0
    %262 = vmatpush1.msra.mxu0 %v246
    %263 = vmatprep.subr.mxu0 0.0
    %264 = vmatpush1.msra.mxu0 %v247
    %265 = vmatprep.subr.mxu0 0.0
    %266 = vmatpush1.msra.mxu0 %v248
    %267 = vmatprep.subr.mxu0 0.0
    %268 = vmatpush1.msra.mxu0 0.0
    %269 = vmatprep.subr.mxu0 0.0
    %270 = vmatpush1.msra.mxu0 0.0
    %271 = vmatprep.subr.mxu0 0.0
    %272 = vmatpush1.msra.mxu0 0.0
    %273 = vmatprep.subr.mxu0 0.0
    %274 = vmatpush1.msra.mxu0 0.0
    %275 = vmatprep.subr.mxu0 0.0
    %276 = vmatpush1.msra.mxu0 0.0
    %277 = vmatprep.subr.mxu0 0.0
    %278 = vmatpush1.msra.mxu0 0.0
    %279 = vmatprep.subr.mxu0 0.0
    %280 = vmatpush1.msra.mxu0 0.0
    %281 = vmatprep.subr.mxu0 0.0
    %282 = vmatpush1.msra.mxu0 0.0
    %283 = vmatprep.subr.mxu0 0.0
    %284 = vmatpush1.msra.mxu0 0.0
    %285 = vmatprep.subr.mxu0 0.0
    %286 = vmatpush1.msra.mxu0 0.0
    %287 = vmatprep.subr.mxu0 0.0
    %288 = vmatpush1.msra.mxu0 0.0
    %289 = vmatprep.subr.mxu0 0.0
    %290 = vmatpush1.msra.mxu0 0.0
    %291 = vmatprep.subr.mxu0 0.0
    %292 = vmatpush1.msra.mxu0 0.0
    %293 = vmatprep.subr.mxu0 0.0
    %294 = vmatpush1.msra.mxu0 0.0
    %295 = vmatprep.subr.mxu0 0.0
    %296 = vmatpush1.msra.mxu0 0.0
    %297 = vmatprep.subr.mxu0 0.0
    %298 = vmatpush1.msra.mxu0 0.0
    %299 = vmatprep.subr.mxu0 0.0
    %300 = vmatpush1.msra.mxu0 0.0
    %301 = vmatprep.subr.mxu0 0.0
    %302 = vmatpush1.msra.mxu0 0.0
    %303 = vmatprep.subr.mxu0 0.0
    %304 = vmatpush1.msra.mxu0 0.0
    %305 = vmatprep.subr.mxu0 0.0
    %306 = vmatpush1.msra.mxu0 0.0
    %307 = vmatprep.subr.mxu0 0.0
    %308 = vmatpush1.msra.mxu0 0.0
    %309 = vmatprep.subr.mxu0 0.0
    %310 = vmatpush1.msra.mxu0 0.0
    %311 = vmatprep.subr.mxu0 0.0
    %312 = vmatpush1.msra.mxu0 0.0
    %313 = vmatprep.subr.mxu0 0.0
    %314 = vmatpush1.msra.mxu0 0.0
    %315 = vmatprep.subr.mxu0 0.0
    %316 = vmatpush1.msra.mxu0 0.0
    %317 = vmatprep.subr.mxu0 0.0
    %318 = vmatpush1.msra.mxu0 0.0
    %319 = vmatprep.subr.mxu0 0.0
    %320 = vmatpush1.msra.mxu0 0.0
    %321 = vmatprep.subr.mxu0 0.0
    %322 = vmatpush1.msra.mxu0 0.0
    %323 = vmatprep.mubr.f32.mxu0 0.0
    %324 = vmatmul.mubr.f32.gmra.mrb[0].mxu0 %v257
    %v325 = vpop.f32.mrb[0].mxu0
    %v326 = vadd.f32 %v254, %v325
    %v327 = vpop.f32.mrb[0].mxu0
    %328 = vdwg.mxu0
    %s329 = scalar_lea.vmem [#allocation9], 32
    %v330 = vld [vmem:[%s329] sm:$0xff]
    %v331 = vld [vmem:[%s329 + $0x8] sm:$0xff]
    %v332 = vld [vmem:[%s329 + $0x10] sm:$0xff]
    %v333 = vld [vmem:[%s329 + $0x18] sm:$0xff]
    %s334 = scalar_lea.vmem %s5, 1
    %v335 = vld [vmem:[%s334] sm:$0x1]
    %v337 = vlaneseq
    %v338 = vshrl.u32 %v337, 7
    %v339 = vsub.s32 0, %v338
    %v340 = vrot.slane %v335, %v339
    %342 = vmatprep.subr.mxu0 0.0
    %343 = vmatpush1.msra.mxu0 %v330
    %344 = vmatprep.subr.mxu0 0.0
    %345 = vmatpush1.msra.mxu0 %v331
    %346 = vmatprep.subr.mxu0 0.0
    %347 = vmatpush1.msra.mxu0 %v332
    %348 = vmatprep.subr.mxu0 0.0
    %349 = vmatpush1.msra.mxu0 %v333
    %350 = vmatprep.subr.mxu0 0.0
    %351 = vmatpush1.msra.mxu0 0.0
    %352 = vmatprep.subr.mxu0 0.0
    %353 = vmatpush1.msra.mxu0 0.0
    %354 = vmatprep.subr.mxu0 0.0
    %355 = vmatpush1.msra.mxu0 0.0
    %356 = vmatprep.subr.mxu0 0.0
    %357 = vmatpush1.msra.mxu0 0.0
    %358 = vmatprep.subr.mxu0 0.0
    %359 = vmatpush1.msra.mxu0 0.0
    %360 = vmatprep.subr.mxu0 0.0
    %361 = vmatpush1.msra.mxu0 0.0
    %362 = vmatprep.subr.mxu0 0.0
    %363 = vmatpush1.msra.mxu0 0.0
    %364 = vmatprep.subr.mxu0 0.0
    %365 = vmatpush1.msra.mxu0 0.0
    %366 = vmatprep.subr.mxu0 0.0
    %367 = vmatpush1.msra.mxu0 0.0
    %368 = vmatprep.subr.mxu0 0.0
    %369 = vmatpush1.msra.mxu0 0.0
    %370 = vmatprep.subr.mxu0 0.0
    %371 = vmatpush1.msra.mxu0 0.0
    %372 = vmatprep.subr.mxu0 0.0
    %373 = vmatpush1.msra.mxu0 0.0
    %374 = vmatprep.subr.mxu0 0.0
    %375 = vmatpush1.msra.mxu0 0.0
    %376 = vmatprep.subr.mxu0 0.0
    %377 = vmatpush1.msra.mxu0 0.0
    %378 = vmatprep.subr.mxu0 0.0
    %379 = vmatpush1.msra.mxu0 0.0
    %380 = vmatprep.subr.mxu0 0.0
    %381 = vmatpush1.msra.mxu0 0.0
    %382 = vmatprep.subr.mxu0 0.0
    %383 = vmatpush1.msra.mxu0 0.0
    %384 = vmatprep.subr.mxu0 0.0
    %385 = vmatpush1.msra.mxu0 0.0
    %386 = vmatprep.subr.mxu0 0.0
    %387 = vmatpush1.msra.mxu0 0.0
    %388 = vmatprep.subr.mxu0 0.0
    %389 = vmatpush1.msra.mxu0 0.0
    %390 = vmatprep.subr.mxu0 0.0
    %391 = vmatpush1.msra.mxu0 0.0
    %392 = vmatprep.subr.mxu0 0.0
    %393 = vmatpush1.msra.mxu0 0.0
    %394 = vmatprep.subr.mxu0 0.0
    %395 = vmatpush1.msra.mxu0 0.0
    %396 = vmatprep.subr.mxu0 0.0
    %397 = vmatpush1.msra.mxu0 0.0
    %398 = vmatprep.subr.mxu0 0.0
    %399 = vmatpush1.msra.mxu0 0.0
    %400 = vmatprep.subr.mxu0 0.0
    %401 = vmatpush1.msra.mxu0 0.0
    %402 = vmatprep.subr.mxu0 0.0
    %403 = vmatpush1.msra.mxu0 0.0
    %404 = vmatprep.subr.mxu0 0.0
    %405 = vmatpush1.msra.mxu0 0.0
    %406 = vmatprep.mubr.f32.mxu0 0.0
    %407 = vmatmul.mubr.f32.gmra.mrb[0].mxu0 %v257
    %v408 = vpop.f32.mrb[0].mxu0
    %v409 = vadd.f32 %v340, %v408
    %v410 = vpop.f32.mrb[0].mxu0
    %411 = vdwg.mxu0
    %s412 = scalar_lea.vmem [#allocation9], 64
    %v413 = vld [vmem:[%s412] sm:$0xff]
    %v414 = vld [vmem:[%s412 + $0x8] sm:$0xff]
    %v415 = vld [vmem:[%s412 + $0x10] sm:$0xff]
    %v416 = vld [vmem:[%s412 + $0x18] sm:$0xff]
    %s417 = scalar_lea.vmem %s5, 2
    %v418 = vld [vmem:[%s417] sm:$0x1]
    %v420 = vlaneseq
    %v421 = vshrl.u32 %v420, 7
    %v422 = vsub.s32 0, %v421
    %v423 = vrot.slane %v418, %v422
    %425 = vmatprep.subr.mxu0 0.0
    %426 = vmatpush1.msra.mxu0 %v413
    %427 = vmatprep.subr.mxu0 0.0
    %428 = vmatpush1.msra.mxu0 %v414
    %429 = vmatprep.subr.mxu0 0.0
    %430 = vmatpush1.msra.mxu0 %v415
    %431 = vmatprep.subr.mxu0 0.0
    %432 = vmatpush1.msra.mxu0 %v416
    %433 = vmatprep.subr.mxu0 0.0
    %434 = vmatpush1.msra.mxu0 0.0
    %435 = vmatprep.subr.mxu0 0.0
    %436 = vmatpush1.msra.mxu0 0.0
    %437 = vmatprep.subr.mxu0 0.0
    %438 = vmatpush1.msra.mxu0 0.0
    %439 = vmatprep.subr.mxu0 0.0
    %440 = vmatpush1.msra.mxu0 0.0
    %441 = vmatprep.subr.mxu0 0.0
    %442 = vmatpush1.msra.mxu0 0.0
    %443 = vmatprep.subr.mxu0 0.0
    %444 = vmatpush1.msra.mxu0 0.0
    %445 = vmatprep.subr.mxu0 0.0
    %446 = vmatpush1.msra.mxu0 0.0
    %447 = vmatprep.subr.mxu0 0.0
    %448 = vmatpush1.msra.mxu0 0.0
    %449 = vmatprep.subr.mxu0 0.0
    %450 = vmatpush1.msra.mxu0 0.0
    %451 = vmatprep.subr.mxu0 0.0
    %452 = vmatpush1.msra.mxu0 0.0
    %453 = vmatprep.subr.mxu0 0.0
    %454 = vmatpush1.msra.mxu0 0.0
    %455 = vmatprep.subr.mxu0 0.0
    %456 = vmatpush1.msra.mxu0 0.0
    %457 = vmatprep.subr.mxu0 0.0
    %458 = vmatpush1.msra.mxu0 0.0
    %459 = vmatprep.subr.mxu0 0.0
    %460 = vmatpush1.msra.mxu0 0.0
    %461 = vmatprep.subr.mxu0 0.0
    %462 = vmatpush1.msra.mxu0 0.0
    %463 = vmatprep.subr.mxu0 0.0
    %464 = vmatpush1.msra.mxu0 0.0
    %465 = vmatprep.subr.mxu0 0.0
    %466 = vmatpush1.msra.mxu0 0.0
    %467 = vmatprep.subr.mxu0 0.0
    %468 = vmatpush1.msra.mxu0 0.0
    %469 = vmatprep.subr.mxu0 0.0
    %470 = vmatpush1.msra.mxu0 0.0
    %471 = vmatprep.subr.mxu0 0.0
    %472 = vmatpush1.msra.mxu0 0.0
    %473 = vmatprep.subr.mxu0 0.0
    %474 = vmatpush1.msra.mxu0 0.0
    %475 = vmatprep.subr.mxu0 0.0
    %476 = vmatpush1.msra.mxu0 0.0
    %477 = vmatprep.subr.mxu0 0.0
    %478 = vmatpush1.msra.mxu0 0.0
    %479 = vmatprep.subr.mxu0 0.0
    %480 = vmatpush1.msra.mxu0 0.0
    %481 = vmatprep.subr.mxu0 0.0
    %482 = vmatpush1.msra.mxu0 0.0
    %483 = vmatprep.subr.mxu0 0.0
    %484 = vmatpush1.msra.mxu0 0.0
    %485 = vmatprep.subr.mxu0 0.0
    %486 = vmatpush1.msra.mxu0 0.0
    %487 = vmatprep.subr.mxu0 0.0
    %488 = vmatpush1.msra.mxu0 0.0
    %489 = vmatprep.mubr.f32.mxu0 0.0
    %490 = vmatmul.mubr.f32.gmra.mrb[0].mxu0 %v257
    %v491 = vpop.f32.mrb[0].mxu0
    %v492 = vadd.f32 %v423, %v491
    %v493 = vpop.f32.mrb[0].mxu0
    %494 = vdwg.mxu0
    %v495 = vld [vmem:[#allocation11] sm:$0xff]
    %v496 = vld [vmem:[#allocation11 + $0x8] sm:$0xff]
    %v497 = vld [vmem:[#allocation11 + $0x10] sm:$0xff]
    %v498 = vld [vmem:[#allocation11 + $0x18] sm:$0xff]
    %v499 = vld [vmem:[%s6] sm:$0x1]
    %v501 = vlaneseq
    %v502 = vshrl.u32 %v501, 7
    %v503 = vsub.s32 0, %v502
    %v504 = vrot.slane %v499, %v503
    %v507 = vsel %vm170, %v244, 0
    %509 = vmatprep.subr.mxu0 0.0
    %510 = vmatpush1.msra.mxu0 %v495
    %511 = vmatprep.subr.mxu0 0.0
    %512 = vmatpush1.msra.mxu0 %v496
    %513 = vmatprep.subr.mxu0 0.0
    %514 = vmatpush1.msra.mxu0 %v497
    %515 = vmatprep.subr.mxu0 0.0
    %516 = vmatpush1.msra.mxu0 %v498
    %517 = vmatprep.subr.mxu0 0.0
    %518 = vmatpush1.msra.mxu0 0.0
    %519 = vmatprep.subr.mxu0 0.0
    %520 = vmatpush1.msra.mxu0 0.0
    %521 = vmatprep.subr.mxu0 0.0
    %522 = vmatpush1.msra.mxu0 0.0
    %523 = vmatprep.subr.mxu0 0.0
    %524 = vmatpush1.msra.mxu0 0.0
    %525 = vmatprep.subr.mxu0 0.0
    %526 = vmatpush1.msra.mxu0 0.0
    %527 = vmatprep.subr.mxu0 0.0
    %528 = vmatpush1.msra.mxu0 0.0
    %529 = vmatprep.subr.mxu0 0.0
    %530 = vmatpush1.msra.mxu0 0.0
    %531 = vmatprep.subr.mxu0 0.0
    %532 = vmatpush1.msra.mxu0 0.0
    %533 = vmatprep.subr.mxu0 0.0
    %534 = vmatpush1.msra.mxu0 0.0
    %535 = vmatprep.subr.mxu0 0.0
    %536 = vmatpush1.msra.mxu0 0.0
    %537 = vmatprep.subr.mxu0 0.0
    %538 = vmatpush1.msra.mxu0 0.0
    %539 = vmatprep.subr.mxu0 0.0
    %540 = vmatpush1.msra.mxu0 0.0
    %541 = vmatprep.subr.mxu0 0.0
    %542 = vmatpush1.msra.mxu0 0.0
    %543 = vmatprep.subr.mxu0 0.0
    %544 = vmatpush1.msra.mxu0 0.0
    %545 = vmatprep.subr.mxu0 0.0
    %546 = vmatpush1.msra.mxu0 0.0
    %547 = vmatprep.subr.mxu0 0.0
    %548 = vmatpush1.msra.mxu0 0.0
    %549 = vmatprep.subr.mxu0 0.0
    %550 = vmatpush1.msra.mxu0 0.0
    %551 = vmatprep.subr.mxu0 0.0
    %552 = vmatpush1.msra.mxu0 0.0
    %553 = vmatprep.subr.mxu0 0.0
    %554 = vmatpush1.msra.mxu0 0.0
    %555 = vmatprep.subr.mxu0 0.0
    %556 = vmatpush1.msra.mxu0 0.0
    %557 = vmatprep.subr.mxu0 0.0
    %558 = vmatpush1.msra.mxu0 0.0
    %559 = vmatprep.subr.mxu0 0.0
    %560 = vmatpush1.msra.mxu0 0.0
    %561 = vmatprep.subr.mxu0 0.0
    %562 = vmatpush1.msra.mxu0 0.0
    %563 = vmatprep.subr.mxu0 0.0
    %564 = vmatpush1.msra.mxu0 0.0
    %565 = vmatprep.subr.mxu0 0.0
    %566 = vmatpush1.msra.mxu0 0.0
    %567 = vmatprep.subr.mxu0 0.0
    %568 = vmatpush1.msra.mxu0 0.0
    %569 = vmatprep.subr.mxu0 0.0
    %570 = vmatpush1.msra.mxu0 0.0
    %571 = vmatprep.subr.mxu0 0.0
    %572 = vmatpush1.msra.mxu0 0.0
    %573 = vmatprep.mubr.f32.mxu0 0.0
    %574 = vmatmul.mubr.f32.gmra.mrb[0].mxu0 %v507
    %v575 = vpop.f32.mrb[0].mxu0
    %v576 = vadd.f32 %v504, %v575
    %v577 = vpop.f32.mrb[0].mxu0
    %578 = vdwg.mxu0
    %s579 = scalar_lea.vmem [#allocation11], 32
    %v580 = vld [vmem:[%s579] sm:$0xff]
    %v581 = vld [vmem:[%s579 + $0x8] sm:$0xff]
    %v582 = vld [vmem:[%s579 + $0x10] sm:$0xff]
    %v583 = vld [vmem:[%s579 + $0x18] sm:$0xff]
    %s584 = scalar_lea.vmem %s6, 1
    %v585 = vld [vmem:[%s584] sm:$0x1]
    %v587 = vlaneseq
    %v588 = vshrl.u32 %v587, 7
    %v589 = vsub.s32 0, %v588
    %v590 = vrot.slane %v585, %v589
    %592 = vmatprep.subr.mxu0 0.0
    %593 = vmatpush1.msra.mxu0 %v580
    %594 = vmatprep.subr.mxu0 0.0
    %595 = vmatpush1.msra.mxu0 %v581
    %596 = vmatprep.subr.mxu0 0.0
    %597 = vmatpush1.msra.mxu0 %v582
    %598 = vmatprep.subr.mxu0 0.0
    %599 = vmatpush1.msra.mxu0 %v583
    %600 = vmatprep.subr.mxu0 0.0
    %601 = vmatpush1.msra.mxu0 0.0
    %602 = vmatprep.subr.mxu0 0.0
    %603 = vmatpush1.msra.mxu0 0.0
    %604 = vmatprep.subr.mxu0 0.0
    %605 = vmatpush1.msra.mxu0 0.0
    %606 = vmatprep.subr.mxu0 0.0
    %607 = vmatpush1.msra.mxu0 0.0
    %608 = vmatprep.subr.mxu0 0.0
    %609 = vmatpush1.msra.mxu0 0.0
    %610 = vmatprep.subr.mxu0 0.0
    %611 = vmatpush1.msra.mxu0 0.0
    %612 = vmatprep.subr.mxu0 0.0
    %613 = vmatpush1.msra.mxu0 0.0
    %614 = vmatprep.subr.mxu0 0.0
    %615 = vmatpush1.msra.mxu0 0.0
    %616 = vmatprep.subr.mxu0 0.0
    %617 = vmatpush1.msra.mxu0 0.0
    %618 = vmatprep.subr.mxu0 0.0
    %619 = vmatpush1.msra.mxu0 0.0
    %620 = vmatprep.subr.mxu0 0.0
    %621 = vmatpush1.msra.mxu0 0.0
    %622 = vmatprep.subr.mxu0 0.0
    %623 = vmatpush1.msra.mxu0 0.0
    %624 = vmatprep.subr.mxu0 0.0
    %625 = vmatpush1.msra.mxu0 0.0
    %626 = vmatprep.subr.mxu0 0.0
    %627 = vmatpush1.msra.mxu0 0.0
    %628 = vmatprep.subr.mxu0 0.0
    %629 = vmatpush1.msra.mxu0 0.0
    %630 = vmatprep.subr.mxu0 0.0
    %631 = vmatpush1.msra.mxu0 0.0
    %632 = vmatprep.subr.mxu0 0.0
    %633 = vmatpush1.msra.mxu0 0.0
    %634 = vmatprep.subr.mxu0 0.0
    %635 = vmatpush1.msra.mxu0 0.0
    %636 = vmatprep.subr.mxu0 0.0
    %637 = vmatpush1.msra.mxu0 0.0
    %638 = vmatprep.subr.mxu0 0.0
    %639 = vmatpush1.msra.mxu0 0.0
    %640 = vmatprep.subr.mxu0 0.0
    %641 = vmatpush1.msra.mxu0 0.0
    %642 = vmatprep.subr.mxu0 0.0
    %643 = vmatpush1.msra.mxu0 0.0
    %644 = vmatprep.subr.mxu0 0.0
    %645 = vmatpush1.msra.mxu0 0.0
    %646 = vmatprep.subr.mxu0 0.0
    %647 = vmatpush1.msra.mxu0 0.0
    %648 = vmatprep.subr.mxu0 0.0
    %649 = vmatpush1.msra.mxu0 0.0
    %650 = vmatprep.subr.mxu0 0.0
    %651 = vmatpush1.msra.mxu0 0.0
    %652 = vmatprep.subr.mxu0 0.0
    %653 = vmatpush1.msra.mxu0 0.0
    %654 = vmatprep.subr.mxu0 0.0
    %655 = vmatpush1.msra.mxu0 0.0
    %656 = vmatprep.mubr.f32.mxu0 0.0
    %657 = vmatmul.mubr.f32.gmra.mrb[0].mxu0 %v507
    %v658 = vpop.f32.mrb[0].mxu0
    %v659 = vadd.f32 %v590, %v658
    %v660 = vpop.f32.mrb[0].mxu0
    %661 = vdwg.mxu0
    %s662 = scalar_lea.vmem [#allocation11], 64
    %v663 = vld [vmem:[%s662] sm:$0xff]
    %v664 = vld [vmem:[%s662 + $0x8] sm:$0xff]
    %v665 = vld [vmem:[%s662 + $0x10] sm:$0xff]
    %v666 = vld [vmem:[%s662 + $0x18] sm:$0xff]
    %s667 = scalar_lea.vmem %s6, 2
    %v668 = vld [vmem:[%s667] sm:$0x1]
    %v670 = vlaneseq
    %v671 = vshrl.u32 %v670, 7
    %v672 = vsub.s32 0, %v671
    %v673 = vrot.slane %v668, %v672
    %675 = vmatprep.subr.mxu0 0.0
    %676 = vmatpush1.msra.mxu0 %v663
    %677 = vmatprep.subr.mxu0 0.0
    %678 = vmatpush1.msra.mxu0 %v664
    %679 = vmatprep.subr.mxu0 0.0
    %680 = vmatpush1.msra.mxu0 %v665
    %681 = vmatprep.subr.mxu0 0.0
    %682 = vmatpush1.msra.mxu0 %v666
    %683 = vmatprep.subr.mxu0 0.0
    %684 = vmatpush1.msra.mxu0 0.0
    %685 = vmatprep.subr.mxu0 0.0
    %686 = vmatpush1.msra.mxu0 0.0
    %687 = vmatprep.subr.mxu0 0.0
    %688 = vmatpush1.msra.mxu0 0.0
    %689 = vmatprep.subr.mxu0 0.0
    %690 = vmatpush1.msra.mxu0 0.0
    %691 = vmatprep.subr.mxu0 0.0
    %692 = vmatpush1.msra.mxu0 0.0
    %693 = vmatprep.subr.mxu0 0.0
    %694 = vmatpush1.msra.mxu0 0.0
    %695 = vmatprep.subr.mxu0 0.0
    %696 = vmatpush1.msra.mxu0 0.0
    %697 = vmatprep.subr.mxu0 0.0
    %698 = vmatpush1.msra.mxu0 0.0
    %699 = vmatprep.subr.mxu0 0.0
    %700 = vmatpush1.msra.mxu0 0.0
    %701 = vmatprep.subr.mxu0 0.0
    %702 = vmatpush1.msra.mxu0 0.0
    %703 = vmatprep.subr.mxu0 0.0
    %704 = vmatpush1.msra.mxu0 0.0
    %705 = vmatprep.subr.mxu0 0.0
    %706 = vmatpush1.msra.mxu0 0.0
    %707 = vmatprep.subr.mxu0 0.0
    %708 = vmatpush1.msra.mxu0 0.0
    %709 = vmatprep.subr.mxu0 0.0
    %710 = vmatpush1.msra.mxu0 0.0
    %711 = vmatprep.subr.mxu0 0.0
    %712 = vmatpush1.msra.mxu0 0.0
    %713 = vmatprep.subr.mxu0 0.0
    %714 = vmatpush1.msra.mxu0 0.0
    %715 = vmatprep.subr.mxu0 0.0
    %716 = vmatpush1.msra.mxu0 0.0
    %717 = vmatprep.subr.mxu0 0.0
    %718 = vmatpush1.msra.mxu0 0.0
    %719 = vmatprep.subr.mxu0 0.0
    %720 = vmatpush1.msra.mxu0 0.0
    %721 = vmatprep.subr.mxu0 0.0
    %722 = vmatpush1.msra.mxu0 0.0
    %723 = vmatprep.subr.mxu0 0.0
    %724 = vmatpush1.msra.mxu0 0.0
    %725 = vmatprep.subr.mxu0 0.0
    %726 = vmatpush1.msra.mxu0 0.0
    %727 = vmatprep.subr.mxu0 0.0
    %728 = vmatpush1.msra.mxu0 0.0
    %729 = vmatprep.subr.mxu0 0.0
    %730 = vmatpush1.msra.mxu0 0.0
    %731 = vmatprep.subr.mxu0 0.0
    %732 = vmatpush1.msra.mxu0 0.0
    %733 = vmatprep.subr.mxu0 0.0
    %734 = vmatpush1.msra.mxu0 0.0
    %735 = vmatprep.subr.mxu0 0.0
    %736 = vmatpush1.msra.mxu0 0.0
    %737 = vmatprep.subr.mxu0 0.0
    %738 = vmatpush1.msra.mxu0 0.0
    %739 = vmatprep.mubr.f32.mxu0 0.0
    %740 = vmatmul.mubr.f32.gmra.mrb[0].mxu0 %v507
    %v741 = vpop.f32.mrb[0].mxu0
    %v742 = vadd.f32 %v673, %v741
    %v743 = vpop.f32.mrb[0].mxu0
    %744 = vdwg.mxu0
    %v745 = vadd.f32 %v326, %v576
    %v746 = vxor.u32 %v745, 2147483648
    %v747 = vmul.f32 %v746, 1.442695
    %v748 = vpow.pop %v747
    %v749 = vadd.f32 %v748, 1.0
    %v750 = vrcp.pop %v749
    %v751 = vmul.f32 1.0, %v750
    %v752 = vadd.f32 %v409, %v659
    %v753 = vxor.u32 %v752, 2147483648
    %v754 = vmul.f32 %v753, 1.442695
    %v755 = vpow.pop %v754
    %v756 = vadd.f32 %v755, 1.0
    %v757 = vrcp.pop %v756
    %v758 = vmul.f32 1.0, %v757
    %v759 = vmul.f32 %v751, %v742
    %v760 = vadd.f32 %v492, %v759
    %v761 = vtanh.pop %v760
    %v762 = vsub.f32 1.0, %v758
    %v763 = vmul.f32 %v762, %v761
    %v764 = vmul.f32 %v758, %v244
    %v765 = vadd.f32 %v763, %v764
    %v766 = vld [vmem:[#allocation14] sm:$0xff]
    %v767 = vld [vmem:[#allocation14 + $0x8] sm:$0xff]
    %v768 = vld [vmem:[#allocation14 + $0x10] sm:$0xff]
    %v769 = vld [vmem:[#allocation14 + $0x18] sm:$0xff]
    %v770 = vld [vmem:[#allocation14 + $0x20] sm:$0xff]
    %v771 = vld [vmem:[#allocation14 + $0x28] sm:$0xff]
    %v772 = vld [vmem:[#allocation14 + $0x30] sm:$0xff]
    %v773 = vld [vmem:[#allocation14 + $0x38] sm:$0xff]
    %v775 = vcombine.high %v765, %v765
    %v777 = vunpack.c.l.s4 1966171168
    %v778 = vunpack.c.0.s8 %v777
    %v779 = vlaneseq
    %v780 = vshrl.u32 %v779, 7
    %v781 = vsub.s32 %v778, %v780
    %v782 = vrot.slane %v765, %v781
    %v784 = vunpack.c.l.s4 1966171168
    %v785 = vunpack.c.0.s8 %v784
    %v786 = vlaneseq
    %v787 = vshrl.u32 %v786, 7
    %v788 = vsub.s32 %v785, %v787
    %v789 = vrot.slane %v775, %v788
    %v790 = vcombine.high %v782, %v782
    %v791 = vcombine.high %v789, %v789
    %v793 = vunpack.c.l.s4 1966171168
    %v794 = vunpack.c.0.s8 %v793
    %v795 = vlaneseq
    %v796 = vshrl.u32 %v795, 7
    %v797 = vsub.s32 %v794, %v796
    %v798 = vrot.slane %v782, %v797
    %v800 = vunpack.c.l.s4 1966171168
    %v801 = vunpack.c.0.s8 %v800
    %v802 = vlaneseq
    %v803 = vshrl.u32 %v802, 7
    %v804 = vsub.s32 %v801, %v803
    %v805 = vrot.slane %v789, %v804
    %v807 = vunpack.c.l.s4 1966171168
    %v808 = vunpack.c.0.s8 %v807
    %v809 = vlaneseq
    %v810 = vshrl.u32 %v809, 7
    %v811 = vsub.s32 %v808, %v810
    %v812 = vrot.slane %v790, %v811
    %v814 = vunpack.c.l.s4 1966171168
    %v815 = vunpack.c.0.s8 %v814
    %v816 = vlaneseq
    %v817 = vshrl.u32 %v816, 7
    %v818 = vsub.s32 %v815, %v817
    %v819 = vrot.slane %v791, %v818
    %v820 = vcombine.high %v798, %v798
    %v821 = vcombine.high %v805, %v805
    %v822 = vcombine.high %v812, %v812
    %v823 = vcombine.high %v819, %v819
    %v824 = vlaneseq
    %v825 = vshrl.u32 %v824, 7
    %v826 = vsub.s32 0, %v825
    %v827 = vrot.slane %v798, %v826
    %v828 = vlaneseq
    %v829 = vshrl.u32 %v828, 7
    %v830 = vsub.s32 0, %v829
    %v831 = vrot.slane %v812, %v830
    %v832 = vlaneseq
    %v833 = vshrl.u32 %v832, 7
    %v834 = vsub.s32 0, %v833
    %v835 = vrot.slane %v820, %v834
    %v836 = vlaneseq
    %v837 = vshrl.u32 %v836, 7
    %v838 = vsub.s32 0, %v837
    %v839 = vrot.slane %v822, %v838
    %v840 = vlaneseq
    %v841 = vshrl.u32 %v840, 7
    %v842 = vsub.s32 0, %v841
    %v843 = vrot.slane %v805, %v842
    %v844 = vlaneseq
    %v845 = vshrl.u32 %v844, 7
    %v846 = vsub.s32 0, %v845
    %v847 = vrot.slane %v819, %v846
    %v848 = vlaneseq
    %v849 = vshrl.u32 %v848, 7
    %v850 = vsub.s32 0, %v849
    %v851 = vrot.slane %v821, %v850
    %v852 = vlaneseq
    %v853 = vshrl.u32 %v852, 7
    %v854 = vsub.s32 0, %v853
    %v855 = vrot.slane %v823, %v854
    %v864 = vmul.f32 %v766, %v827
    %v865 = vmul.f32 %v767, %v831
    %v866 = vmul.f32 %v768, %v835
    %v867 = vmul.f32 %v769, %v839
    %v868 = vmul.f32 %v770, %v843
    %v869 = vmul.f32 %v771, %v847
    %v870 = vmul.f32 %v772, %v851
    %v871 = vmul.f32 %v773, %v855
    %v872 = vsel %vm170, %v864, 0.0
    %873 = vadd.xlane.f32.xlu0 %v872
    %v874 = vpop.xlane.xlu0 %873
    %v875 = vsel %vm170, %v865, 0.0
    %876 = vadd.xlane.f32.xlu0 %v875
    %v877 = vpop.xlane.xlu0 %876
    %v878 = vsel %vm170, %v866, 0.0
    %879 = vadd.xlane.f32.xlu0 %v878
    %v880 = vpop.xlane.xlu0 %879
    %v881 = vsel %vm170, %v867, 0.0
    %882 = vadd.xlane.f32.xlu0 %v881
    %v883 = vpop.xlane.xlu0 %882
    %v884 = vsel %vm170, %v868, 0.0
    %885 = vadd.xlane.f32.xlu0 %v884
    %v886 = vpop.xlane.xlu0 %885
    %v887 = vsel %vm170, %v869, 0.0
    %888 = vadd.xlane.f32.xlu0 %v887
    %v889 = vpop.xlane.xlu0 %888
    %v890 = vsel %vm170, %v870, 0.0
    %891 = vadd.xlane.f32.xlu0 %v890
    %v892 = vpop.xlane.xlu0 %891
    %v893 = vsel %vm170, %v871, 0.0
    %894 = vadd.xlane.f32.xlu0 %v893
    %v895 = vpop.xlane.xlu0 %894
    %s896 = sld [smem:[#allocation7]]
    %v897 = vstv %s896
    %v898 = vsel %vm131, %v897, 0
    %p899 = scmp.gt.s32.totalorder %s896, 0
    %s900 = scalar_select %p899, %s896, 0
    %s901 = sld [smem:[#allocation7 + $0x1]]
    %v902 = vstv %s901
    %v903 = vsel %vm135, %v902, %v898
    %p904 = scmp.gt.s32.totalorder %s900, %s901
    %s905 = scalar_select %p904, %s900, %s901
    %s906 = sld [smem:[#allocation7 + $0x2]]
    %v907 = vstv %s906
    %v908 = vsel %vm139, %v907, %v903
    %p909 = scmp.gt.s32.totalorder %s905, %s906
    %s910 = scalar_select %p909, %s905, %s906
    %s911 = sld [smem:[#allocation7 + $0x3]]
    %v912 = vstv %s911
    %v913 = vsel %vm143, %v912, %v908
    %p914 = scmp.gt.s32.totalorder %s910, %s911
    %s915 = scalar_select %p914, %s910, %s911
    %s916 = sld [smem:[#allocation7 + $0x4]]
    %v917 = vstv %s916
    %v918 = vsel %vm147, %v917, %v913
    %p919 = scmp.gt.s32.totalorder %s915, %s916
    %s920 = scalar_select %p919, %s915, %s916
    %s921 = sld [smem:[#allocation7 + $0x5]]
    %v922 = vstv %s921
    %v923 = vsel %vm151, %v922, %v918
    %p924 = scmp.gt.s32.totalorder %s920, %s921
    %s925 = scalar_select %p924, %s920, %s921
    %s926 = sld [smem:[#allocation7 + $0x6]]
    %v927 = vstv %s926
    %v928 = vsel %vm155, %v927, %v923
    %p929 = scmp.gt.s32.totalorder %s925, %s926
    %s930 = scalar_select %p929, %s925, %s926
    %s931 = sld [smem:[#allocation7 + $0x7]]
    %v932 = vstv %s931
    %v933 = vsel %vm159, %v932, %v928
    %p934 = scmp.gt.s32.totalorder %s930, %s931
    %s935 = scalar_select %p934, %s930, %s931
    %vm936 = vcmp.ge.s32.totalorder %v128, %v933
    %v937 = vstv %s935
    %vm938 = vcmp.lt.s32.totalorder %v933, %v937
    %vm939 = vmand %vm936, %vm938
    %v948 = vlaneseq
    %v949 = vshrl.u32 %v948, 7
    %v950 = vsub.s32 %v128, %v949
    %v951 = vrot.slane %v874, %v950
    %v952 = vlaneseq
    %v953 = vshrl.u32 %v952, 7
    %v954 = vsub.s32 %v128, %v953
    %v955 = vrot.slane %v877, %v954
    %v956 = vlaneseq
    %v957 = vshrl.u32 %v956, 7
    %v958 = vsub.s32 %v128, %v957
    %v959 = vrot.slane %v880, %v958
    %v960 = vlaneseq
    %v961 = vshrl.u32 %v960, 7
    %v962 = vsub.s32 %v128, %v961
    %v963 = vrot.slane %v883, %v962
    %v964 = vlaneseq
    %v965 = vshrl.u32 %v964, 7
    %v966 = vsub.s32 %v128, %v965
    %v967 = vrot.slane %v886, %v966
    %v968 = vlaneseq
    %v969 = vshrl.u32 %v968, 7
    %v970 = vsub.s32 %v128, %v969
    %v971 = vrot.slane %v889, %v970
    %v972 = vlaneseq
    %v973 = vshrl.u32 %v972, 7
    %v974 = vsub.s32 %v128, %v973
    %v975 = vrot.slane %v892, %v974
    %v976 = vlaneseq
    %v977 = vshrl.u32 %v976, 7
    %v978 = vsub.s32 %v128, %v977
    %v979 = vrot.slane %v895, %v978
    %vm980 = vcmask 1041409
    %v981 = vsel %vm980, %v955, %v951
    %vm982 = vcmask 1042434
    %v983 = vsel %vm982, %v959, %v981
    %vm984 = vcmask 1043459
    %v985 = vsel %vm984, %v963, %v983
    %vm986 = vcmask 1044484
    %v987 = vsel %vm986, %v967, %v985
    %vm988 = vcmask 1045509
    %v989 = vsel %vm988, %v971, %v987
    %vm990 = vcmask 1046534
    %v991 = vsel %vm990, %v975, %v989
    %vm992 = vcmask 1047559
    %v993 = vsel %vm992, %v979, %v991
    %v995 = vsel %vm939, -1e+30, %v993
    %vm996 = vcmask 64512
    %v997 = vsel %vm996, %v995, -inf
    %998 = vmax.xlane.f32.xlu0 %v997
    %v999 = vpop.xlane.xlu0 %998
    %v1000 = vsub.f32 %v995, %v999
    %v1001 = vmul.f32 %v1000, 1.442695
    %v1002 = vpow.pop %v1001
    %v1003 = vsel %vm996, %v1002, 0.0
    %1004 = vadd.xlane.f32.xlu0 %v1003
    %v1005 = vpop.xlane.xlu0 %1004
    %v1006 = vrcp.pop %v1005
    %v1007 = vmul.f32 %v1002, %v1006
    %v1008 = vlaneseq
    %v1009 = vshrl.u32 %v1008, 7
    %v1010 = vsub.s32 0, %v1009
    %v1011 = vrot.slane %v1007, %v1010
    %1013 = vbcast.lane.b32.xlu0 %v1011, 256
    %v1014 = vpop.permute.xlu0 %1013
    %v1015 = vlaneseq
    %v1016 = vshrl.u32 %v1015, 7
    %v1017 = vsub.s32 1, %v1016
    %v1018 = vrot.slane %v1007, %v1017
    %1020 = vbcast.lane.b32.xlu0 %v1018, 256
    %v1021 = vpop.permute.xlu0 %1020
    %v1022 = vlaneseq
    %v1023 = vshrl.u32 %v1022, 7
    %v1024 = vsub.s32 2, %v1023
    %v1025 = vrot.slane %v1007, %v1024
    %1027 = vbcast.lane.b32.xlu0 %v1025, 256
    %v1028 = vpop.permute.xlu0 %1027
    %v1029 = vlaneseq
    %v1030 = vshrl.u32 %v1029, 7
    %v1031 = vsub.s32 3, %v1030
    %v1032 = vrot.slane %v1007, %v1031
    %1034 = vbcast.lane.b32.xlu0 %v1032, 256
    %v1035 = vpop.permute.xlu0 %1034
    %v1036 = vlaneseq
    %v1037 = vshrl.u32 %v1036, 7
    %v1038 = vsub.s32 4, %v1037
    %v1039 = vrot.slane %v1007, %v1038
    %1041 = vbcast.lane.b32.xlu0 %v1039, 256
    %v1042 = vpop.permute.xlu0 %1041
    %v1043 = vlaneseq
    %v1044 = vshrl.u32 %v1043, 7
    %v1045 = vsub.s32 5, %v1044
    %v1046 = vrot.slane %v1007, %v1045
    %1048 = vbcast.lane.b32.xlu0 %v1046, 256
    %v1049 = vpop.permute.xlu0 %1048
    %v1050 = vlaneseq
    %v1051 = vshrl.u32 %v1050, 7
    %v1052 = vsub.s32 6, %v1051
    %v1053 = vrot.slane %v1007, %v1052
    %1055 = vbcast.lane.b32.xlu0 %v1053, 256
    %v1056 = vpop.permute.xlu0 %1055
    %v1057 = vlaneseq
    %v1058 = vshrl.u32 %v1057, 7
    %v1059 = vsub.s32 7, %v1058
    %v1060 = vrot.slane %v1007, %v1059
    %1062 = vbcast.lane.b32.xlu0 %v1060, 256
    %v1063 = vpop.permute.xlu0 %1062
    %v1064 = vmul.f32 %v1014, %v766
    %v1065 = vmul.f32 %v1021, %v767
    %v1066 = vmul.f32 %v1028, %v768
    %v1067 = vmul.f32 %v1035, %v769
    %v1068 = vmul.f32 %v1042, %v770
    %v1069 = vmul.f32 %v1049, %v771
    %v1070 = vmul.f32 %v1056, %v772
    %v1071 = vmul.f32 %v1063, %v773
    %v1072 = vsel %vm170, %v1064, 0.0
    %v1073 = vrot.slane %v1072, 4
    %v1074 = vadd.f32 %v1072, %v1073
    %v1075 = vrot.slane %v1074, 2
    %v1076 = vadd.f32 %v1074, %v1075
    %v1077 = vrot.slane %v1076, 1
    %v1078 = vadd.f32 %v1076, %v1077
    %v1079 = vsel %vm170, %v1065, 0.0
    %v1080 = vrot.slane %v1079, 4
    %v1081 = vadd.f32 %v1079, %v1080
    %v1082 = vrot.slane %v1081, 2
    %v1083 = vadd.f32 %v1081, %v1082
    %v1084 = vrot.slane %v1083, 1
    %v1085 = vadd.f32 %v1083, %v1084
    %v1086 = vsel %vm170, %v1066, 0.0
    %v1087 = vrot.slane %v1086, 4
    %v1088 = vadd.f32 %v1086, %v1087
    %v1089 = vrot.slane %v1088, 2
    %v1090 = vadd.f32 %v1088, %v1089
    %v1091 = vrot.slane %v1090, 1
    %v1092 = vadd.f32 %v1090, %v1091
    %v1093 = vsel %vm170, %v1067, 0.0
    %v1094 = vrot.slane %v1093, 4
    %v1095 = vadd.f32 %v1093, %v1094
    %v1096 = vrot.slane %v1095, 2
    %v1097 = vadd.f32 %v1095, %v1096
    %v1098 = vrot.slane %v1097, 1
    %v1099 = vadd.f32 %v1097, %v1098
    %v1100 = vsel %vm170, %v1068, 0.0
    %v1101 = vrot.slane %v1100, 4
    %v1102 = vadd.f32 %v1100, %v1101
    %v1103 = vrot.slane %v1102, 2
    %v1104 = vadd.f32 %v1102, %v1103
    %v1105 = vrot.slane %v1104, 1
    %v1106 = vadd.f32 %v1104, %v1105
    %v1107 = vsel %vm170, %v1069, 0.0
    %v1108 = vrot.slane %v1107, 4
    %v1109 = vadd.f32 %v1107, %v1108
    %v1110 = vrot.slane %v1109, 2
    %v1111 = vadd.f32 %v1109, %v1110
    %v1112 = vrot.slane %v1111, 1
    %v1113 = vadd.f32 %v1111, %v1112
    %v1114 = vsel %vm170, %v1070, 0.0
    %v1115 = vrot.slane %v1114, 4
    %v1116 = vadd.f32 %v1114, %v1115
    %v1117 = vrot.slane %v1116, 2
    %v1118 = vadd.f32 %v1116, %v1117
    %v1119 = vrot.slane %v1118, 1
    %v1120 = vadd.f32 %v1118, %v1119
    %v1121 = vsel %vm170, %v1071, 0.0
    %v1122 = vrot.slane %v1121, 4
    %v1123 = vadd.f32 %v1121, %v1122
    %v1124 = vrot.slane %v1123, 2
    %v1125 = vadd.f32 %v1123, %v1124
    %v1126 = vrot.slane %v1125, 1
    %v1127 = vadd.f32 %v1125, %v1126
    %v1128 = vld [vmem:[#allocation12] sm:$0xff]
    %v1129 = vld [vmem:[#allocation12 + $0x8] sm:$0xff]
    %v1130 = vld [vmem:[#allocation12 + $0x10] sm:$0xff]
    %v1131 = vld [vmem:[#allocation12 + $0x18] sm:$0xff]
    %v1132 = vsel %vm170, %v765, 0
    %1134 = vmatprep.subr.mxu0 0.0
    %1135 = vmatpush1.msra.mxu0 %v1128
    %1136 = vmatprep.subr.mxu0 0.0
    %1137 = vmatpush1.msra.mxu0 %v1129
    %1138 = vmatprep.subr.mxu0 0.0
    %1139 = vmatpush1.msra.mxu0 %v1130
    %1140 = vmatprep.subr.mxu0 0.0
    %1141 = vmatpush1.msra.mxu0 %v1131
    %1142 = vmatprep.subr.mxu0 0.0
    %1143 = vmatpush1.msra.mxu0 0.0
    %1144 = vmatprep.subr.mxu0 0.0
    %1145 = vmatpush1.msra.mxu0 0.0
    %1146 = vmatprep.subr.mxu0 0.0
    %1147 = vmatpush1.msra.mxu0 0.0
    %1148 = vmatprep.subr.mxu0 0.0
    %1149 = vmatpush1.msra.mxu0 0.0
    %1150 = vmatprep.subr.mxu0 0.0
    %1151 = vmatpush1.msra.mxu0 0.0
    %1152 = vmatprep.subr.mxu0 0.0
    %1153 = vmatpush1.msra.mxu0 0.0
    %1154 = vmatprep.subr.mxu0 0.0
    %1155 = vmatpush1.msra.mxu0 0.0
    %1156 = vmatprep.subr.mxu0 0.0
    %1157 = vmatpush1.msra.mxu0 0.0
    %1158 = vmatprep.subr.mxu0 0.0
    %1159 = vmatpush1.msra.mxu0 0.0
    %1160 = vmatprep.subr.mxu0 0.0
    %1161 = vmatpush1.msra.mxu0 0.0
    %1162 = vmatprep.subr.mxu0 0.0
    %1163 = vmatpush1.msra.mxu0 0.0
    %1164 = vmatprep.subr.mxu0 0.0
    %1165 = vmatpush1.msra.mxu0 0.0
    %1166 = vmatprep.subr.mxu0 0.0
    %1167 = vmatpush1.msra.mxu0 0.0
    %1168 = vmatprep.subr.mxu0 0.0
    %1169 = vmatpush1.msra.mxu0 0.0
    %1170 = vmatprep.subr.mxu0 0.0
    %1171 = vmatpush1.msra.mxu0 0.0
    %1172 = vmatprep.subr.mxu0 0.0
    %1173 = vmatpush1.msra.mxu0 0.0
    %1174 = vmatprep.subr.mxu0 0.0
    %1175 = vmatpush1.msra.mxu0 0.0
    %1176 = vmatprep.subr.mxu0 0.0
    %1177 = vmatpush1.msra.mxu0 0.0
    %1178 = vmatprep.subr.mxu0 0.0
    %1179 = vmatpush1.msra.mxu0 0.0
    %1180 = vmatprep.subr.mxu0 0.0
    %1181 = vmatpush1.msra.mxu0 0.0
    %1182 = vmatprep.subr.mxu0 0.0
    %1183 = vmatpush1.msra.mxu0 0.0
    %1184 = vmatprep.subr.mxu0 0.0
    %1185 = vmatpush1.msra.mxu0 0.0
    %1186 = vmatprep.subr.mxu0 0.0
    %1187 = vmatpush1.msra.mxu0 0.0
    %1188 = vmatprep.subr.mxu0 0.0
    %1189 = vmatpush1.msra.mxu0 0.0
    %1190 = vmatprep.subr.mxu0 0.0
    %1191 = vmatpush1.msra.mxu0 0.0
    %1192 = vmatprep.subr.mxu0 0.0
    %1193 = vmatpush1.msra.mxu0 0.0
    %1194 = vmatprep.subr.mxu0 0.0
    %1195 = vmatpush1.msra.mxu0 0.0
    %1196 = vmatprep.subr.mxu0 0.0
    %1197 = vmatpush1.msra.mxu0 0.0
    %1198 = vmatprep.mubr.f32.mxu0 0.0
    %1199 = vmatmul.mubr.f32.gmra.mrb[0].mxu0 %v1132
    %v1200 = vpop.f32.mrb[0].mxu0
    %v1201 = vadd.f32 0.0, %v1200
    %v1202 = vpop.f32.mrb[0].mxu0
    %1203 = vdwg.mxu0
    %v1204 = vsel %vm170, %v1201, -inf
    %1205 = vmax.xlane.f32.xlu0 %v1204
    %v1206 = vpop.xlane.xlu0 %1205
    %v1207 = vsub.f32 %v1201, %v1206
    %v1208 = vmul.f32 %v1207, 1.442695
    %v1209 = vpow.pop %v1208
    %v1210 = vsel %vm170, %v1209, 0.0
    %1211 = vadd.xlane.f32.xlu0 %v1210
    %v1212 = vpop.xlane.xlu0 %1211
    %v1213 = vlog2.pop %v1212
    %v1214 = vmul.f32 %v1213, 0.6931472
    %v1215 = vadd.f32 %v1214, %v1206
    %v1216 = vsub.f32 %v1201, %v1215
    %v1225 = vsel %vm980, %v1085, %v1078
    %v1226 = vsel %vm982, %v1092, %v1225
    %v1227 = vsel %vm984, %v1099, %v1226
    %v1228 = vsel %vm986, %v1106, %v1227
    %v1229 = vsel %vm988, %v1113, %v1228
    %v1230 = vsel %vm990, %v1120, %v1229
    %v1231 = vsel %vm992, %v1127, %v1230
    %1232 = vrot.lane.b32.xlu0 %v1231, 32
    %v1233 = vpop.permute.xlu0 %1232
    %1236 = vrot.lane.b32.xlu0 %v1216, 64
    %v1237 = vpop.permute.xlu0 %1236
    %1240 = vrot.lane.b32.xlu0 %v1007, 96
    %v1241 = vpop.permute.xlu0 %1240
    %v1243 = vsel %vm170, %v765, %v1233
    %vm1244 = vcmask 523264
    %v1245 = vsel %vm1244, %v1243, %v1237
    %vm1246 = vcmask 785408
    %v1247 = vsel %vm1246, %v1245, %v1241
    %vm1248 = vcmask 850944
    %v1249 = vsel %vm1248, %v1247, 0.0
    %1250 = vst [vmem:[#allocation15] sm:$0xff] %v1249
    // Predicated region
    $region70: #{tpu_custom_call.1} parent=1 // pred_check
      _
    $region71: #{tpu_custom_call.1} parent=1 // pred_check_branch
      %1252 = sbr.rel (0) target = $region73
    $region72: #{tpu_custom_call.1} parent=1 // pred_region
      %s1254 = ssub.s32 128, 128
      %1255 = vsyncadd [#allocation4], %s1254
      %s1257 = sshll.u32 [#allocation15], 4
      %s1258 = int_to_ptr.vmem [resolvable:$true] %s1257
      %1260 = dma.vmem_to_hbm [thread:$0]  %s1258, 128, %s10, [#allocation4]
    $region73: #{tpu_custom_call.1} parent=1 // pred_fallthru
      _
    // Predicated region
    $region74: #{tpu_custom_call.1} parent=1 // pred_check
      _
    $region75: #{tpu_custom_call.1} parent=1 // pred_check_branch
      %1262 = sbr.rel (0) target = $region77
    $region76: #{tpu_custom_call.1} parent=1 // pred_region
      %1263 = dma.done [#allocation4], 128
    $region77: #{tpu_custom_call.1} parent=1 // pred_fallthru
      _
    %1264 = vsyncpa [#allocation3], 1
    %1265 = vsyncpa [#allocation10], 1
    %1266 = vsyncpa [#allocation13], 1
    %1267 = vsyncpa [#allocation4], 1
    %1268 = vsyncpa [#allocation5], 1
    %1269 = vsyncpa [#allocation6], 1

</llo_original>
